<compile_context>
chip_gen: v7x
topology: tpu7x:2x2x1
jax: 0.10.0
libtpu: 0.0.40
codegen_flags: <defaults>
</compile_context>

<pallas_src>
import functools

import jax
import jax.numpy as jnp
from jax.experimental import pallas as pl
from jax.experimental.pallas import tpu as pltpu


_LANE = 128  # TPU lane width: 128-multiple last dims give unmasked vector stores.


def _round_up(n, m):
    return -(-n // m) * m


# ---------------------------------------------------------------------------
# Kernel
# ---------------------------------------------------------------------------
def _sru_cell_kernel(x_ref, hx_ref, hx_tile_ref, wt_ref, bt_ref, out_ref,
                     lhs_ref, *, input_size, hidden_pad):
    """One output tile of one SRUCell step.

    x_ref       : (B, I)      f32   input mixture weights (full, VMEM-resident)
    hx_ref      : (B, Hp)     f32   previous hidden state (full, VMEM-resident)
    hx_tile_ref : (B, TN)     f32   hx slice matching this output tile (residual)
    wt_ref      : (I*Hp, TN)  bf16  wt_flat[i*Hp+g, h] = weight[h, g, i]
    bt_ref      : (I, TN)     bf16  bt[i, h]           = bias[h, i]
    out_ref     : (B, TN)           hy tile
    lhs_ref     : (B, I*Hp)   f32   scratch for the flattened x (x) hx outer product
    """
    x = x_ref[...]                       # (B, I)
    hx = hx_ref[...]                     # (B, Hp)

    # lhs[b, i*Hp + g] = x[b, i] * hx[b, g].  Static, lane-aligned slab stores
    # (VPU work only — no MXU push/drain per i).  Rebuilt every grid step (it
    # is tiny) so the grid axis can be "parallel" with no assumption that the
    # j == 0 step ran on this core (megacore/v7x safe).
    for i in range(input_size):
        lhs_ref[:, i * hidden_pad:(i + 1) * hidden_pad] = x[:, i:i + 1] * hx

    # Single long-K MXU contraction over (i, g):  (B, I*Hp) @ (I*Hp, TN).
    # bf16 weights are upcast in-kernel; accumulation is f32.
    rec = jnp.dot(lhs_ref[...], wt_ref[...].astype(jnp.float32),
                  preferred_element_type=jnp.float32)
    # Input-mixed bias: (B, I) @ (I, TN) — tiny.
    tb = jnp.dot(x, bt_ref[...].astype(jnp.float32),
                 preferred_element_type=jnp.float32)

    # Residual (highway) connection.
    out_ref[...] = (hx_tile_ref[...] + rec + tb).astype(out_ref.dtype)


# ---------------------------------------------------------------------------
# One-time parameter re-layout (hoist OUT of the per-step path)
# ---------------------------------------------------------------------------
def prepare_sru_params(weight, bias, param_dtype=jnp.bfloat16):
    """Re-layout SRUCell parameters for the Pallas kernel.

    Call ONCE at parameter-setup time: the transpose + pad + flatten + cast is
    a full read/write of the weight and must not be paid on every timestep.

    weight: (H, G, I) -> wt_flat: (I*Hp, Hp), wt_flat[i*Hp+g, h] = weight[h, g, i]
    bias:   (H, I)    -> bt:      (I, Hp),    bt[i, h] = bias[h, i]
    """
    hidden, g, input_size = weight.shape
    assert g == hidden and bias.shape == (hidden, input_size)
    hp = _round_up(hidden, _LANE)
    pad = hp - hidden
    wt = jnp.transpose(weight, (2, 1, 0))                           # (I, G, H)
    wt = jnp.pad(wt, ((0, 0), (0, pad), (0, pad)))                  # (I, Hp, Hp)
    wt_flat = wt.reshape(input_size * hp, hp).astype(param_dtype)   # (I*Hp, Hp)
    bt = jnp.pad(bias.T, ((0, 0), (0, pad))).astype(param_dtype)    # (I, Hp)
    return wt_flat, bt


# ---------------------------------------------------------------------------
# Tile / VMEM sizing
# ---------------------------------------------------------------------------
def _vmem_bytes(batch, input_size, hp, tn, w_bytes, out_bytes=4):
    k = input_size * hp
    dbl = 2  # BlockSpec double-buffering
    return (dbl * (k * tn * w_bytes                # weight tile (x2 buffers)
                   + input_size * tn * w_bytes     # bias tile
                   + batch * tn * 4                # hx residual tile
                   + batch * tn * out_bytes)       # output tile
            + k * tn * 4                           # in-kernel f32 upcast of weight tile
            + batch * k * 4                        # lhs scratch
            + batch * input_size * 4 + batch * hp * 4)  # resident x, hx


def _pick_tile_n(batch, input_size, hp, w_bytes, budget_bytes=20 * 1024 * 1024):
    """Largest output tile (multiple of 128; prefer 512/256 for the 2x256^2 MXU
    on v6e/v7x) whose per-step working set fits the VMEM budget."""
    for tn in (512, 256, 128):
        if hp % tn == 0 and _vmem_bytes(batch, input_size, hp, tn, w_bytes) <= budget_bytes:
            return tn
    return _LANE


# ---------------------------------------------------------------------------
# Forward
# ---------------------------------------------------------------------------
# TODO(synk): when stepping this cell over a full sequence, fuse the time loop
# into one pallas_call (grid=(T, Hp//TN), weight on a T-constant index_map so it
# is DMA'd once and stays VMEM-resident, hx carried via VMEM scratch /
# input_output_aliases) so the weight is read from HBM once per sequence
# instead of once per step (may need to stay HBM-tiled on v7x's 64 MiB VMEM).
def sru_cell_forward_prepared(inp, state, wt_flat, bt, *, hidden_size):
    """SRUCell forward using pre-laid-out parameters (see prepare_sru_params).

    inp:     (B, input_size)   rows expected to sum to 1 (module precondition;
                               not re-asserted here — not traceable under jit).
    state:   (1, B, hidden_size)
    wt_flat: (input_size*Hp, Hp)  bf16
    bt:      (input_size, Hp)     bf16
    returns  (1, B, hidden_size)
    """
    batch, input_size = inp.shape
    hx = state[0]
    k_total, hp = wt_flat.shape
    assert k_total == input_size * hp
    assert hx.shape == (batch, hidden_size) and hidden_size <= hp
    pad = hp - hidden_size

    out_dtype = jnp.result_type(inp.dtype, hx.dtype)
    x = inp.astype(jnp.float32)
    hx_p = jnp.pad(hx.astype(jnp.float32), ((0, 0), (0, pad)))     # (B, Hp)

    w_bytes = jnp.dtype(wt_flat.dtype).itemsize
    tn = _pick_tile_n(batch, input_size, hp, w_bytes)
    grid = (hp // tn,)
    vmem_limit = int(min(64 * 1024 * 1024,
                         max(16 * 1024 * 1024,
                             _vmem_bytes(batch, input_size, hp, tn, w_bytes)
                             + 4 * 1024 * 1024)))

    kernel = functools.partial(_sru_cell_kernel,
                               input_size=input_size, hidden_pad=hp)

    out_p = pl.pallas_call(
        kernel,
        out_shape=jax.ShapeDtypeStruct((batch, hp), out_dtype),
        grid_spec=pltpu.PrefetchScalarGridSpec(
            num_scalar_prefetch=0,
            grid=grid,
            in_specs=[
                pl.BlockSpec((batch, input_size), lambda j: (0, 0)),  # x, resident
                pl.BlockSpec((batch, hp), lambda j: (0, 0)),          # hx, resident
                pl.BlockSpec((batch, tn), lambda j: (0, j)),          # hx residual tile
                pl.BlockSpec((k_total, tn), lambda j: (0, j)),        # weight tile (bf16)
                pl.BlockSpec((input_size, tn), lambda j: (0, j)),     # bias tile (bf16)
            ],
            out_specs=pl.BlockSpec((batch, tn), lambda j: (0, j)),
            scratch_shapes=[pltpu.VMEM((batch, k_total), jnp.float32)],
        ),
        compiler_params=pltpu.CompilerParams(
            # Output tiles are independent -> "parallel": on v7x the two
            # TensorCores each stream half of the (HBM-bound) weight read.
            dimension_semantics=("parallel",),
            vmem_limit_bytes=vmem_limit,
        ),
    )(x, hx_p, hx_p, wt_flat, bt)

    return out_p[:, :hidden_size][None, ...]                         # (1, B, H)


def sru_cell_forward(inp, state, weight, bias):
    """Drop-in equivalent of SRUCell.forward (re-lays-out params every call).

    When stepping over a sequence, call prepare_sru_params() once and use
    sru_cell_forward_prepared() inside the time loop instead.
    """
    wt_flat, bt = prepare_sru_params(weight, bias)
    return sru_cell_forward_prepared(inp, state, wt_flat, bt,
                                     hidden_size=weight.shape[0])


# ---------------------------------------------------------------------------
# Pure-JAX reference (mirrors the PyTorch forward exactly)
# ---------------------------------------------------------------------------
def sru_cell_reference(inp, state, weight, bias):
    hx = state[0]
    trial_weight = (weight[None, :, :, :] * inp[:, None, None, :]).sum(-1)
    trial_bias = (bias[None, :, :] * inp[:, None, :]).sum(-1)
    rec = (trial_weight * hx[:, None, :]).sum(-1)
    hy = hx + rec + trial_bias
    return hy[None, ...]


if __name__ == "__main__":
    B, input_size, hidden_size = 4, 16, 32

    key = jax.random.PRNGKey(0)
    k = jax.random.split(key, 4)

    def q(a):  # snap to the bf16 grid so the bf16 parameter cast and the MXU
               # f32 pass decomposition are exact
        return a.astype(jnp.bfloat16).astype(jnp.float32)

    # Rows of `inp` sum to (almost exactly) 1, matching the module precondition.
    inp = q(jax.nn.softmax(jax.random.normal(k[0], (B, input_size), jnp.float32), axis=-1))
    state = q(jax.random.normal(k[1], (1, B, hidden_size), jnp.float32))
    weight = q(jax.random.normal(k[2], (hidden_size, hidden_size, input_size), jnp.float32))
    bias = q(jax.random.normal(k[3], (hidden_size, input_size), jnp.float32))

    # One-time parameter re-layout, hoisted out of the per-step path.
    wt_flat, bt = prepare_sru_params(weight, bias)

    step = jax.jit(functools.partial(sru_cell_forward_prepared,
                                     hidden_size=hidden_size))
    out = jax.block_until_ready(step(inp, state, wt_flat, bt))

    ref = sru_cell_reference(inp, state, weight, bias)
    assert out.shape == (1, B, hidden_size), out.shape
    assert jnp.allclose(out, ref, atol=1e-3, rtol=1e-3), float(jnp.max(jnp.abs(out - ref)))

    # The drop-in wrapper (re-layout inside) must agree as well.
    out2 = jax.block_until_ready(jax.jit(sru_cell_forward)(inp, state, weight, bias))
    assert jnp.allclose(out2, ref, atol=1e-3, rtol=1e-3)

    print("KERNEL_OK")
</pallas_src>

<mosaic_0001>
module attributes {stable_mosaic.version = 11 : i64} {
  func.func @_sru_cell_kernel(%arg0: i32, %arg1: memref<4x16xf32, #tpu.memory_space<vmem>>, %arg2: memref<4x128xf32, #tpu.memory_space<vmem>>, %arg3: memref<4x128xf32, #tpu.memory_space<vmem>>, %arg4: memref<2048x128xbf16, #tpu.memory_space<vmem>>, %arg5: memref<16x128xbf16, #tpu.memory_space<vmem>>, %arg6: memref<4x128xf32, #tpu.memory_space<vmem>>, %arg7: memref<4x2048xf32, #tpu.memory_space<vmem>>) attributes {dimension_semantics = [#tpu.dimension_semantics<parallel>], iteration_bounds = array<i64: 1>, scalar_prefetch = 0 : i64, scratch_operands = 1 : i64, tpu.core_type = #tpu.core_type<tc>, window_params = [{pipeline_mode = #tpu.pipeline_mode<synchronous>, transform_indices = @transform_0, window_bounds = array<i64: 4, 16>}, {pipeline_mode = #tpu.pipeline_mode<synchronous>, transform_indices = @transform_1, window_bounds = array<i64: 4, 128>}, {transform_indices = @transform_2, window_bounds = array<i64: 4, 128>}, {transform_indices = @transform_3, window_bounds = array<i64: 2048, 128>}, {transform_indices = @transform_4, window_bounds = array<i64: 16, 128>}, {transform_indices = @transform_5, window_bounds = array<i64: 4, 128>}]} {
    %c0 = arith.constant 0 : index
    %c0_0 = arith.constant 0 : index
    %0 = vector.load %arg1[%c0, %c0_0] : memref<4x16xf32, #tpu.memory_space<vmem>>, vector<4x16xf32>
    %c0_1 = arith.constant 0 : index
    %c0_2 = arith.constant 0 : index
    %1 = vector.load %arg2[%c0_1, %c0_2] : memref<4x128xf32, #tpu.memory_space<vmem>>, vector<4x128xf32>
    %2 = vector.extract_strided_slice %0 {offsets = [0, 0], sizes = [4, 1], strides = [1, 1]} : vector<4x16xf32> to vector<4x1xf32>
    %3 = vector.broadcast %2 : vector<4x1xf32> to vector<4x128xf32>
    %4 = arith.mulf %3, %1 : vector<4x128xf32>
    %c0_3 = arith.constant 0 : index
    %c0_4 = arith.constant 0 : index
    %5 = vector.load %arg7[%c0_3, %c0_4] : memref<4x2048xf32, #tpu.memory_space<vmem>>, vector<4x128xf32>
    tpu.vector_store %arg7[%c0_3, %c0_4], %4 {strides = array<i32>} : memref<4x2048xf32, #tpu.memory_space<vmem>>, vector<4x128xf32>,
    %6 = vector.extract_strided_slice %0 {offsets = [0, 1], sizes = [4, 1], strides = [1, 1]} : vector<4x16xf32> to vector<4x1xf32>
    %7 = vector.broadcast %6 : vector<4x1xf32> to vector<4x128xf32>
    %8 = arith.mulf %7, %1 : vector<4x128xf32>
    %c0_5 = arith.constant 0 : index
    %c128 = arith.constant 128 : index
    %9 = vector.load %arg7[%c0_5, %c128] : memref<4x2048xf32, #tpu.memory_space<vmem>>, vector<4x128xf32>
    tpu.vector_store %arg7[%c0_5, %c128], %8 {strides = array<i32>} : memref<4x2048xf32, #tpu.memory_space<vmem>>, vector<4x128xf32>,
    %10 = vector.extract_strided_slice %0 {offsets = [0, 2], sizes = [4, 1], strides = [1, 1]} : vector<4x16xf32> to vector<4x1xf32>
    %11 = vector.broadcast %10 : vector<4x1xf32> to vector<4x128xf32>
    %12 = arith.mulf %11, %1 : vector<4x128xf32>
    %c0_6 = arith.constant 0 : index
    %c256 = arith.constant 256 : index
    %13 = vector.load %arg7[%c0_6, %c256] : memref<4x2048xf32, #tpu.memory_space<vmem>>, vector<4x128xf32>
    tpu.vector_store %arg7[%c0_6, %c256], %12 {strides = array<i32>} : memref<4x2048xf32, #tpu.memory_space<vmem>>, vector<4x128xf32>,
    %14 = vector.extract_strided_slice %0 {offsets = [0, 3], sizes = [4, 1], strides = [1, 1]} : vector<4x16xf32> to vector<4x1xf32>
    %15 = vector.broadcast %14 : vector<4x1xf32> to vector<4x128xf32>
    %16 = arith.mulf %15, %1 : vector<4x128xf32>
    %c0_7 = arith.constant 0 : index
    %c384 = arith.constant 384 : index
    %17 = vector.load %arg7[%c0_7, %c384] : memref<4x2048xf32, #tpu.memory_space<vmem>>, vector<4x128xf32>
    tpu.vector_store %arg7[%c0_7, %c384], %16 {strides = array<i32>} : memref<4x2048xf32, #tpu.memory_space<vmem>>, vector<4x128xf32>,
    %18 = vector.extract_strided_slice %0 {offsets = [0, 4], sizes = [4, 1], strides = [1, 1]} : vector<4x16xf32> to vector<4x1xf32>
    %19 = vector.broadcast %18 : vector<4x1xf32> to vector<4x128xf32>
    %20 = arith.mulf %19, %1 : vector<4x128xf32>
    %c0_8 = arith.constant 0 : index
    %c512 = arith.constant 512 : index
    %21 = vector.load %arg7[%c0_8, %c512] : memref<4x2048xf32, #tpu.memory_space<vmem>>, vector<4x128xf32>
    tpu.vector_store %arg7[%c0_8, %c512], %20 {strides = array<i32>} : memref<4x2048xf32, #tpu.memory_space<vmem>>, vector<4x128xf32>,
    %22 = vector.extract_strided_slice %0 {offsets = [0, 5], sizes = [4, 1], strides = [1, 1]} : vector<4x16xf32> to vector<4x1xf32>
    %23 = vector.broadcast %22 : vector<4x1xf32> to vector<4x128xf32>
    %24 = arith.mulf %23, %1 : vector<4x128xf32>
    %c0_9 = arith.constant 0 : index
    %c640 = arith.constant 640 : index
    %25 = vector.load %arg7[%c0_9, %c640] : memref<4x2048xf32, #tpu.memory_space<vmem>>, vector<4x128xf32>
    tpu.vector_store %arg7[%c0_9, %c640], %24 {strides = array<i32>} : memref<4x2048xf32, #tpu.memory_space<vmem>>, vector<4x128xf32>,
    %26 = vector.extract_strided_slice %0 {offsets = [0, 6], sizes = [4, 1], strides = [1, 1]} : vector<4x16xf32> to vector<4x1xf32>
    %27 = vector.broadcast %26 : vector<4x1xf32> to vector<4x128xf32>
    %28 = arith.mulf %27, %1 : vector<4x128xf32>
    %c0_10 = arith.constant 0 : index
    %c768 = arith.constant 768 : index
    %29 = vector.load %arg7[%c0_10, %c768] : memref<4x2048xf32, #tpu.memory_space<vmem>>, vector<4x128xf32>
    tpu.vector_store %arg7[%c0_10, %c768], %28 {strides = array<i32>} : memref<4x2048xf32, #tpu.memory_space<vmem>>, vector<4x128xf32>,
    %30 = vector.extract_strided_slice %0 {offsets = [0, 7], sizes = [4, 1], strides = [1, 1]} : vector<4x16xf32> to vector<4x1xf32>
    %31 = vector.broadcast %30 : vector<4x1xf32> to vector<4x128xf32>
    %32 = arith.mulf %31, %1 : vector<4x128xf32>
    %c0_11 = arith.constant 0 : index
    %c896 = arith.constant 896 : index
    %33 = vector.load %arg7[%c0_11, %c896] : memref<4x2048xf32, #tpu.memory_space<vmem>>, vector<4x128xf32>
    tpu.vector_store %arg7[%c0_11, %c896], %32 {strides = array<i32>} : memref<4x2048xf32, #tpu.memory_space<vmem>>, vector<4x128xf32>,
    %34 = vector.extract_strided_slice %0 {offsets = [0, 8], sizes = [4, 1], strides = [1, 1]} : vector<4x16xf32> to vector<4x1xf32>
    %35 = vector.broadcast %34 : vector<4x1xf32> to vector<4x128xf32>
    %36 = arith.mulf %35, %1 : vector<4x128xf32>
    %c0_12 = arith.constant 0 : index
    %c1024 = arith.constant 1024 : index
    %37 = vector.load %arg7[%c0_12, %c1024] : memref<4x2048xf32, #tpu.memory_space<vmem>>, vector<4x128xf32>
    tpu.vector_store %arg7[%c0_12, %c1024], %36 {strides = array<i32>} : memref<4x2048xf32, #tpu.memory_space<vmem>>, vector<4x128xf32>,
    %38 = vector.extract_strided_slice %0 {offsets = [0, 9], sizes = [4, 1], strides = [1, 1]} : vector<4x16xf32> to vector<4x1xf32>
    %39 = vector.broadcast %38 : vector<4x1xf32> to vector<4x128xf32>
    %40 = arith.mulf %39, %1 : vector<4x128xf32>
    %c0_13 = arith.constant 0 : index
    %c1152 = arith.constant 1152 : index
    %41 = vector.load %arg7[%c0_13, %c1152] : memref<4x2048xf32, #tpu.memory_space<vmem>>, vector<4x128xf32>
    tpu.vector_store %arg7[%c0_13, %c1152], %40 {strides = array<i32>} : memref<4x2048xf32, #tpu.memory_space<vmem>>, vector<4x128xf32>,
    %42 = vector.extract_strided_slice %0 {offsets = [0, 10], sizes = [4, 1], strides = [1, 1]} : vector<4x16xf32> to vector<4x1xf32>
    %43 = vector.broadcast %42 : vector<4x1xf32> to vector<4x128xf32>
    %44 = arith.mulf %43, %1 : vector<4x128xf32>
    %c0_14 = arith.constant 0 : index
    %c1280 = arith.constant 1280 : index
    %45 = vector.load %arg7[%c0_14, %c1280] : memref<4x2048xf32, #tpu.memory_space<vmem>>, vector<4x128xf32>
    tpu.vector_store %arg7[%c0_14, %c1280], %44 {strides = array<i32>} : memref<4x2048xf32, #tpu.memory_space<vmem>>, vector<4x128xf32>,
    %46 = vector.extract_strided_slice %0 {offsets = [0, 11], sizes = [4, 1], strides = [1, 1]} : vector<4x16xf32> to vector<4x1xf32>
    %47 = vector.broadcast %46 : vector<4x1xf32> to vector<4x128xf32>
    %48 = arith.mulf %47, %1 : vector<4x128xf32>
    %c0_15 = arith.constant 0 : index
    %c1408 = arith.constant 1408 : index
    %49 = vector.load %arg7[%c0_15, %c1408] : memref<4x2048xf32, #tpu.memory_space<vmem>>, vector<4x128xf32>
    tpu.vector_store %arg7[%c0_15, %c1408], %48 {strides = array<i32>} : memref<4x2048xf32, #tpu.memory_space<vmem>>, vector<4x128xf32>,
    %50 = vector.extract_strided_slice %0 {offsets = [0, 12], sizes = [4, 1], strides = [1, 1]} : vector<4x16xf32> to vector<4x1xf32>
    %51 = vector.broadcast %50 : vector<4x1xf32> to vector<4x128xf32>
    %52 = arith.mulf %51, %1 : vector<4x128xf32>
    %c0_16 = arith.constant 0 : index
    %c1536 = arith.constant 1536 : index
    %53 = vector.load %arg7[%c0_16, %c1536] : memref<4x2048xf32, #tpu.memory_space<vmem>>, vector<4x128xf32>
    tpu.vector_store %arg7[%c0_16, %c1536], %52 {strides = array<i32>} : memref<4x2048xf32, #tpu.memory_space<vmem>>, vector<4x128xf32>,
    %54 = vector.extract_strided_slice %0 {offsets = [0, 13], sizes = [4, 1], strides = [1, 1]} : vector<4x16xf32> to vector<4x1xf32>
    %55 = vector.broadcast %54 : vector<4x1xf32> to vector<4x128xf32>
    %56 = arith.mulf %55, %1 : vector<4x128xf32>
    %c0_17 = arith.constant 0 : index
    %c1664 = arith.constant 1664 : index
    %57 = vector.load %arg7[%c0_17, %c1664] : memref<4x2048xf32, #tpu.memory_space<vmem>>, vector<4x128xf32>
    tpu.vector_store %arg7[%c0_17, %c1664], %56 {strides = array<i32>} : memref<4x2048xf32, #tpu.memory_space<vmem>>, vector<4x128xf32>,
    %58 = vector.extract_strided_slice %0 {offsets = [0, 14], sizes = [4, 1], strides = [1, 1]} : vector<4x16xf32> to vector<4x1xf32>
    %59 = vector.broadcast %58 : vector<4x1xf32> to vector<4x128xf32>
    %60 = arith.mulf %59, %1 : vector<4x128xf32>
    %c0_18 = arith.constant 0 : index
    %c1792 = arith.constant 1792 : index
    %61 = vector.load %arg7[%c0_18, %c1792] : memref<4x2048xf32, #tpu.memory_space<vmem>>, vector<4x128xf32>
    tpu.vector_store %arg7[%c0_18, %c1792], %60 {strides = array<i32>} : memref<4x2048xf32, #tpu.memory_space<vmem>>, vector<4x128xf32>,
    %62 = vector.extract_strided_slice %0 {offsets = [0, 15], sizes = [4, 1], strides = [1, 1]} : vector<4x16xf32> to vector<4x1xf32>
    %63 = vector.broadcast %62 : vector<4x1xf32> to vector<4x128xf32>
    %64 = arith.mulf %63, %1 : vector<4x128xf32>
    %c0_19 = arith.constant 0 : index
    %c1920 = arith.constant 1920 : index
    %65 = vector.load %arg7[%c0_19, %c1920] : memref<4x2048xf32, #tpu.memory_space<vmem>>, vector<4x128xf32>
    tpu.vector_store %arg7[%c0_19, %c1920], %64 {strides = array<i32>} : memref<4x2048xf32, #tpu.memory_space<vmem>>, vector<4x128xf32>,
    %c0_20 = arith.constant 0 : index
    %c0_21 = arith.constant 0 : index
    %66 = vector.load %arg7[%c0_20, %c0_21] : memref<4x2048xf32, #tpu.memory_space<vmem>>, vector<4x2048xf32>
    %c0_22 = arith.constant 0 : index
    %c0_23 = arith.constant 0 : index
    %67 = vector.load %arg4[%c0_22, %c0_23] : memref<2048x128xbf16, #tpu.memory_space<vmem>>, vector<2048x128xbf16>
    %68 = arith.extf %67 : vector<2048x128xbf16> to vector<2048x128xf32>
    %cst = arith.constant dense<0.000000e+00> : vector<4x128xf32>
    %69 = tpu.matmul %66, %68, %cst {dimension_numbers = #tpu.dot_dimension_numbers<[1], [0], [0], [1], [0, 0, 1, 1], [], []>} : vector<4x2048xf32>, vector<2048x128xf32>, vector<4x128xf32> -> vector<4x128xf32>
    %c0_24 = arith.constant 0 : index
    %c0_25 = arith.constant 0 : index
    %70 = vector.load %arg5[%c0_24, %c0_25] : memref<16x128xbf16, #tpu.memory_space<vmem>>, vector<16x128xbf16>
    %71 = arith.extf %70 : vector<16x128xbf16> to vector<16x128xf32>
    %cst_26 = arith.constant dense<0.000000e+00> : vector<4x128xf32>
    %72 = tpu.matmul %0, %71, %cst_26 {dimension_numbers = #tpu.dot_dimension_numbers<[1], [0], [0], [1], [0, 0, 1, 1], [], []>} : vector<4x16xf32>, vector<16x128xf32>, vector<4x128xf32> -> vector<4x128xf32>
    %c0_27 = arith.constant 0 : index
    %c0_28 = arith.constant 0 : index
    %73 = vector.load %arg3[%c0_27, %c0_28] : memref<4x128xf32, #tpu.memory_space<vmem>>, vector<4x128xf32>
    %74 = arith.addf %73, %69 : vector<4x128xf32>
    %75 = arith.addf %74, %72 : vector<4x128xf32>
    %c0_29 = arith.constant 0 : index
    %c0_30 = arith.constant 0 : index
    %76 = vector.load %arg6[%c0_29, %c0_30] : memref<4x128xf32, #tpu.memory_space<vmem>>, vector<4x128xf32>
    tpu.vector_store %arg6[%c0_29, %c0_30], %75 {strides = array<i32>} : memref<4x128xf32, #tpu.memory_space<vmem>>, vector<4x128xf32>,
    return
  }
  func.func @transform_0(%arg0: i32) -> (i32, i32) {
    %c0_i32 = arith.constant 0 : i32
    %c0_i32_0 = arith.constant 0 : i32
    %c0_i32_1 = arith.constant 0 : i32
    return %c0_i32, %c0_i32_0 : i32, i32
  }
  func.func @transform_1(%arg0: i32) -> (i32, i32) {
    %c0_i32 = arith.constant 0 : i32
    %c0_i32_0 = arith.constant 0 : i32
    %c0_i32_1 = arith.constant 0 : i32
    return %c0_i32, %c0_i32_0 : i32, i32
  }
  func.func @transform_2(%arg0: i32) -> (i32, i32) {
    %c0_i32 = arith.constant 0 : i32
    %c0_i32_0 = arith.constant 0 : i32
    return %c0_i32, %arg0 : i32, i32
  }
  func.func @transform_3(%arg0: i32) -> (i32, i32) {
    %c0_i32 = arith.constant 0 : i32
    %c0_i32_0 = arith.constant 0 : i32
    return %c0_i32, %arg0 : i32, i32
  }
  func.func @transform_4(%arg0: i32) -> (i32, i32) {
    %c0_i32 = arith.constant 0 : i32
    %c0_i32_0 = arith.constant 0 : i32
    return %c0_i32, %arg0 : i32, i32
  }
  func.func @transform_5(%arg0: i32) -> (i32, i32) {
    %c0_i32 = arith.constant 0 : i32
    %c0_i32_0 = arith.constant 0 : i32
    return %c0_i32, %arg0 : i32, i32
  }
}

</mosaic_0001>

<llo_original>
// kernel: sru_cell_forward_prepared.1
$region0: #{sru_cell_forward_prepared.1}
  #allocation0 [shape = 'u32[]', space=smem, size = 0x4, offset = 0x4, fixed_abs, tag = 'smem constant byte address 0x4 - core index']
  #allocation1 [shape = 'u32[144,128]{1,0:T(1,128)}', space=vmem, size = 0x12000, scoped, tag = 'internal scratch']
  #allocation2 [shape = 'f32[4,2048]{1,0:T(4,128)}', space=vmem, size = 0x8000, scoped, tag = 'scratch operand']
  %s0 = inlined_call_operand.vmem [shape: f32[4,16], index: 0, kind: input, shape index: {}]
  %s1 = inlined_call_operand.vmem [shape: f32[4,128], index: 1, kind: input, shape index: {}, may-alias: {1,2}]
  %s2 = inlined_call_operand.vmem [shape: f32[4,128], index: 2, kind: input, shape index: {}, may-alias: {1,2}]
  %s3 = inlined_call_operand.hbm [shape: bf16[2048,128], index: 3, kind: input, shape index: {}]
  %s4 = inlined_call_operand.vmem [shape: bf16[16,128], index: 4, kind: input, shape index: {}]
  %s5 = inlined_call_operand.vmem [shape: f32[4,128], index: 5, kind: output, shape index: {}]
  %s6 = sld [smem:[#allocation0]]
  $region34: #{sru_cell_forward_prepared.1} parent=0
    _
  %s8 = ssub.s32 1, %s6
  %s9 = scalar_select 0, %s8, %s6
  $region1: #{sru_cell_forward_prepared.1} parent=0
    #allocation3 [shape = 'u8[524288]{0}', space=vmem, size = 0x80000, scoped, tag = 'input window, operand 3, single buffered']
    #allocation4 [shape = 's32[1]{0}', space=sflag, size = 0x4, scoped, tag = 'scoped memory for sru_cell_forward_prepared.1']
    %10 = vsyncpa [#allocation4], 0
    // Predicated region
    $region2: #{sru_cell_forward_prepared.1} parent=1 // pred_check
      _
    $region3: #{sru_cell_forward_prepared.1} parent=1 // pred_check_branch
      %12 = sbr.rel (0) target = $region5
    $region4: #{sru_cell_forward_prepared.1} parent=1 // pred_region
      _
    $region5: #{sru_cell_forward_prepared.1} parent=1 // pred_fallthru
      _
    // Predicated region
    $region6: #{sru_cell_forward_prepared.1} parent=1 // pred_check
      _
    $region7: #{sru_cell_forward_prepared.1} parent=1 // pred_check_branch
      %14 = sbr.rel (0) target = $region9
    $region8: #{sru_cell_forward_prepared.1} parent=1 // pred_region
      _
    $region9: #{sru_cell_forward_prepared.1} parent=1 // pred_fallthru
      _
    // Predicated region
    $region10: #{sru_cell_forward_prepared.1} parent=1 // pred_check
      _
    $region11: #{sru_cell_forward_prepared.1} parent=1 // pred_check_branch
      %16 = sbr.rel (0) target = $region13
    $region12: #{sru_cell_forward_prepared.1} parent=1 // pred_region
      _
    $region13: #{sru_cell_forward_prepared.1} parent=1 // pred_fallthru
      _
    // Predicated region
    $region14: #{sru_cell_forward_prepared.1} parent=1 // pred_check
      _
    $region15: #{sru_cell_forward_prepared.1} parent=1 // pred_check_branch
      %18 = sbr.rel (0) target = $region17
    $region16: #{sru_cell_forward_prepared.1} parent=1 // pred_region
      %s20 = ssub.s32 16384, 16384
      %21 = vsyncadd [#allocation4], %s20
      %s22 = sshll.u32 [#allocation3], 4
      %s23 = int_to_ptr.vmem [resolvable:$true] %s22
      %28 = dma.hbm_to_vmem [thread:$0]  %s3, 16384, %s23, [#allocation4], 64, 64, 4
    $region17: #{sru_cell_forward_prepared.1} parent=1 // pred_fallthru
      _
    // Predicated region
    $region18: #{sru_cell_forward_prepared.1} parent=1 // pred_check
      _
    $region19: #{sru_cell_forward_prepared.1} parent=1 // pred_check_branch
      %30 = sbr.rel (0) target = $region21
    $region20: #{sru_cell_forward_prepared.1} parent=1 // pred_region
      _
    $region21: #{sru_cell_forward_prepared.1} parent=1 // pred_fallthru
      _
    // Predicated region
    $region22: #{sru_cell_forward_prepared.1} parent=1 // pred_check
      _
    $region23: #{sru_cell_forward_prepared.1} parent=1 // pred_check_branch
      %32 = sbr.rel (0) target = $region25
    $region24: #{sru_cell_forward_prepared.1} parent=1 // pred_region
      %33 = dma.done [#allocation4], 16384
    $region25: #{sru_cell_forward_prepared.1} parent=1 // pred_fallthru
      _
    %v34 = vld [vmem:[%s0] sm:$0xf]
    %v35 = vld [vmem:[%s1] sm:$0xf]
    %37 = vset.pattern.permute.xlu0 0
    %38 = vperm.xlu0 %37, %v34
    %v39 = vpop.permute.xlu0 %38
    %v41 = vmul.f32 %v39, %v35
    %42 = vst [vmem:[#allocation2] sm:$0xf] %v41
    %43 = vset.pattern.permute.xlu0 1
    %44 = vperm.xlu0 %43, %v34
    %v45 = vpop.permute.xlu0 %44
    %v47 = vmul.f32 %v45, %v35
    %48 = vst [vmem:[#allocation2 + $0x4] sm:$0xf] %v47
    %49 = vset.pattern.permute.xlu0 2
    %50 = vperm.xlu0 %49, %v34
    %v51 = vpop.permute.xlu0 %50
    %v53 = vmul.f32 %v51, %v35
    %54 = vst [vmem:[#allocation2 + $0x8] sm:$0xf] %v53
    %55 = vset.pattern.permute.xlu0 3
    %56 = vperm.xlu0 %55, %v34
    %v57 = vpop.permute.xlu0 %56
    %v59 = vmul.f32 %v57, %v35
    %60 = vst [vmem:[#allocation2 + $0xc] sm:$0xf] %v59
    %61 = vset.pattern.permute.xlu0 4
    %62 = vperm.xlu0 %61, %v34
    %v63 = vpop.permute.xlu0 %62
    %v65 = vmul.f32 %v63, %v35
    %66 = vst [vmem:[#allocation2 + $0x10] sm:$0xf] %v65
    %67 = vset.pattern.permute.xlu0 5
    %68 = vperm.xlu0 %67, %v34
    %v69 = vpop.permute.xlu0 %68
    %v71 = vmul.f32 %v69, %v35
    %72 = vst [vmem:[#allocation2 + $0x14] sm:$0xf] %v71
    %73 = vset.pattern.permute.xlu0 6
    %74 = vperm.xlu0 %73, %v34
    %v75 = vpop.permute.xlu0 %74
    %v77 = vmul.f32 %v75, %v35
    %78 = vst [vmem:[#allocation2 + $0x18] sm:$0xf] %v77
    %79 = vset.pattern.permute.xlu0 7
    %80 = vperm.xlu0 %79, %v34
    %v81 = vpop.permute.xlu0 %80
    %v83 = vmul.f32 %v81, %v35
    %84 = vst [vmem:[#allocation2 + $0x1c] sm:$0xf] %v83
    %85 = vset.pattern.permute.xlu0 8
    %86 = vperm.xlu0 %85, %v34
    %v87 = vpop.permute.xlu0 %86
    %v89 = vmul.f32 %v87, %v35
    %90 = vst [vmem:[#allocation2 + $0x20] sm:$0xf] %v89
    %91 = vset.pattern.permute.xlu0 9
    %92 = vperm.xlu0 %91, %v34
    %v93 = vpop.permute.xlu0 %92
    %v95 = vmul.f32 %v93, %v35
    %96 = vst [vmem:[#allocation2 + $0x24] sm:$0xf] %v95
    %97 = vset.pattern.permute.xlu0 10
    %98 = vperm.xlu0 %97, %v34
    %v99 = vpop.permute.xlu0 %98
    %v101 = vmul.f32 %v99, %v35
    %102 = vst [vmem:[#allocation2 + $0x28] sm:$0xf] %v101
    %103 = vset.pattern.permute.xlu0 11
    %104 = vperm.xlu0 %103, %v34
    %v105 = vpop.permute.xlu0 %104
    %v107 = vmul.f32 %v105, %v35
    %108 = vst [vmem:[#allocation2 + $0x2c] sm:$0xf] %v107
    %109 = vset.pattern.permute.xlu0 12
    %110 = vperm.xlu0 %109, %v34
    %v111 = vpop.permute.xlu0 %110
    %v113 = vmul.f32 %v111, %v35
    %114 = vst [vmem:[#allocation2 + $0x30] sm:$0xf] %v113
    %115 = vset.pattern.permute.xlu0 13
    %116 = vperm.xlu0 %115, %v34
    %v117 = vpop.permute.xlu0 %116
    %v119 = vmul.f32 %v117, %v35
    %120 = vst [vmem:[#allocation2 + $0x34] sm:$0xf] %v119
    %121 = vset.pattern.permute.xlu0 14
    %122 = vperm.xlu0 %121, %v34
    %v123 = vpop.permute.xlu0 %122
    %v125 = vmul.f32 %v123, %v35
    %126 = vst [vmem:[#allocation2 + $0x38] sm:$0xf] %v125
    %127 = vset.pattern.permute.xlu0 15
    %128 = vperm.xlu0 %127, %v34
    %v129 = vpop.permute.xlu0 %128
    %v131 = vmul.f32 %v129, %v35
    %132 = vst [vmem:[#allocation2 + $0x3c] sm:$0xf] %v131
    %v133 = vld [vmem:[#allocation2] sm:$0xff]
    %v134 = vld [vmem:[#allocation2 + $0x8] sm:$0xff]
    %v135 = vld [vmem:[#allocation2 + $0x10] sm:$0xff]
    %v136 = vld [vmem:[#allocation2 + $0x18] sm:$0xff]
    %v137 = vld [vmem:[#allocation2 + $0x20] sm:$0xff]
    %v138 = vld [vmem:[#allocation2 + $0x28] sm:$0xff]
    %v139 = vld [vmem:[#allocation2 + $0x30] sm:$0xff]
    %v140 = vld [vmem:[#allocation2 + $0x38] sm:$0xff]
    %v141 = vld [vmem:[#allocation3] sm:$0xf]
    %v142 = vld [vmem:[#allocation3 + $0x4] sm:$0xf]
    %v143 = vld [vmem:[#allocation3 + $0x8] sm:$0xf]
    %v144 = vld [vmem:[#allocation3 + $0xc] sm:$0xf]
    %v145 = vld [vmem:[#allocation3 + $0x10] sm:$0xf]
    %v146 = vld [vmem:[#allocation3 + $0x14] sm:$0xf]
    %v147 = vld [vmem:[#allocation3 + $0x18] sm:$0xf]
    %v148 = vld [vmem:[#allocation3 + $0x1c] sm:$0xf]
    %v149 = vld [vmem:[#allocation3 + $0x20] sm:$0xf]
    %v150 = vld [vmem:[#allocation3 + $0x24] sm:$0xf]
    %v151 = vld [vmem:[#allocation3 + $0x28] sm:$0xf]
    %v152 = vld [vmem:[#allocation3 + $0x2c] sm:$0xf]
    %v153 = vld [vmem:[#allocation3 + $0x30] sm:$0xf]
    %v154 = vld [vmem:[#allocation3 + $0x34] sm:$0xf]
    %v155 = vld [vmem:[#allocation3 + $0x38] sm:$0xf]
    %v156 = vld [vmem:[#allocation3 + $0x3c] sm:$0xf]
    %v157 = vld [vmem:[#allocation3 + $0x40] sm:$0xf]
    %v158 = vld [vmem:[#allocation3 + $0x44] sm:$0xf]
    %v159 = vld [vmem:[#allocation3 + $0x48] sm:$0xf]
    %v160 = vld [vmem:[#allocation3 + $0x4c] sm:$0xf]
    %v161 = vld [vmem:[#allocation3 + $0x50] sm:$0xf]
    %v162 = vld [vmem:[#allocation3 + $0x54] sm:$0xf]
    %v163 = vld [vmem:[#allocation3 + $0x58] sm:$0xf]
    %v164 = vld [vmem:[#allocation3 + $0x5c] sm:$0xf]
    %v165 = vld [vmem:[#allocation3 + $0x60] sm:$0xf]
    %v166 = vld [vmem:[#allocation3 + $0x64] sm:$0xf]
    %v167 = vld [vmem:[#allocation3 + $0x68] sm:$0xf]
    %v168 = vld [vmem:[#allocation3 + $0x6c] sm:$0xf]
    %v169 = vld [vmem:[#allocation3 + $0x70] sm:$0xf]
    %v170 = vld [vmem:[#allocation3 + $0x74] sm:$0xf]
    %v171 = vld [vmem:[#allocation3 + $0x78] sm:$0xf]
    %v172 = vld [vmem:[#allocation3 + $0x7c] sm:$0xf]
    %v173 = vld [vmem:[#allocation3 + $0x80] sm:$0xf]
    %v174 = vld [vmem:[#allocation3 + $0x84] sm:$0xf]
    %v175 = vld [vmem:[#allocation3 + $0x88] sm:$0xf]
    %v176 = vld [vmem:[#allocation3 + $0x8c] sm:$0xf]
    %v177 = vld [vmem:[#allocation3 + $0x90] sm:$0xf]
    %v178 = vld [vmem:[#allocation3 + $0x94] sm:$0xf]
    %v179 = vld [vmem:[#allocation3 + $0x98] sm:$0xf]
    %v180 = vld [vmem:[#allocation3 + $0x9c] sm:$0xf]
    %v181 = vld [vmem:[#allocation3 + $0xa0] sm:$0xf]
    %v182 = vld [vmem:[#allocation3 + $0xa4] sm:$0xf]
    %v183 = vld [vmem:[#allocation3 + $0xa8] sm:$0xf]
    %v184 = vld [vmem:[#allocation3 + $0xac] sm:$0xf]
    %v185 = vld [vmem:[#allocation3 + $0xb0] sm:$0xf]
    %v186 = vld [vmem:[#allocation3 + $0xb4] sm:$0xf]
    %v187 = vld [vmem:[#allocation3 + $0xb8] sm:$0xf]
    %v188 = vld [vmem:[#allocation3 + $0xbc] sm:$0xf]
    %v189 = vld [vmem:[#allocation3 + $0xc0] sm:$0xf]
    %v190 = vld [vmem:[#allocation3 + $0xc4] sm:$0xf]
    %v191 = vld [vmem:[#allocation3 + $0xc8] sm:$0xf]
    %v192 = vld [vmem:[#allocation3 + $0xcc] sm:$0xf]
    %v193 = vld [vmem:[#allocation3 + $0xd0] sm:$0xf]
    %v194 = vld [vmem:[#allocation3 + $0xd4] sm:$0xf]
    %v195 = vld [vmem:[#allocation3 + $0xd8] sm:$0xf]
    %v196 = vld [vmem:[#allocation3 + $0xdc] sm:$0xf]
    %v197 = vld [vmem:[#allocation3 + $0xe0] sm:$0xf]
    %v198 = vld [vmem:[#allocation3 + $0xe4] sm:$0xf]
    %v199 = vld [vmem:[#allocation3 + $0xe8] sm:$0xf]
    %v200 = vld [vmem:[#allocation3 + $0xec] sm:$0xf]
    %v201 = vld [vmem:[#allocation3 + $0xf0] sm:$0xf]
    %v202 = vld [vmem:[#allocation3 + $0xf4] sm:$0xf]
    %v203 = vld [vmem:[#allocation3 + $0xf8] sm:$0xf]
    %v204 = vld [vmem:[#allocation3 + $0xfc] sm:$0xf]
    %v205 = vld [vmem:[#allocation3 + $0x100] sm:$0xf]
    %v206 = vld [vmem:[#allocation3 + $0x104] sm:$0xf]
    %v207 = vld [vmem:[#allocation3 + $0x108] sm:$0xf]
    %v208 = vld [vmem:[#allocation3 + $0x10c] sm:$0xf]
    %v209 = vld [vmem:[#allocation3 + $0x110] sm:$0xf]
    %v210 = vld [vmem:[#allocation3 + $0x114] sm:$0xf]
    %v211 = vld [vmem:[#allocation3 + $0x118] sm:$0xf]
    %v212 = vld [vmem:[#allocation3 + $0x11c] sm:$0xf]
    %v213 = vld [vmem:[#allocation3 + $0x120] sm:$0xf]
    %v214 = vld [vmem:[#allocation3 + $0x124] sm:$0xf]
    %v215 = vld [vmem:[#allocation3 + $0x128] sm:$0xf]
    %v216 = vld [vmem:[#allocation3 + $0x12c] sm:$0xf]
    %v217 = vld [vmem:[#allocation3 + $0x130] sm:$0xf]
    %v218 = vld [vmem:[#allocation3 + $0x134] sm:$0xf]
    %v219 = vld [vmem:[#allocation3 + $0x138] sm:$0xf]
    %v220 = vld [vmem:[#allocation3 + $0x13c] sm:$0xf]
    %v221 = vld [vmem:[#allocation3 + $0x140] sm:$0xf]
    %v222 = vld [vmem:[#allocation3 + $0x144] sm:$0xf]
    %v223 = vld [vmem:[#allocation3 + $0x148] sm:$0xf]
    %v224 = vld [vmem:[#allocation3 + $0x14c] sm:$0xf]
    %v225 = vld [vmem:[#allocation3 + $0x150] sm:$0xf]
    %v226 = vld [vmem:[#allocation3 + $0x154] sm:$0xf]
    %v227 = vld [vmem:[#allocation3 + $0x158] sm:$0xf]
    %v228 = vld [vmem:[#allocation3 + $0x15c] sm:$0xf]
    %v229 = vld [vmem:[#allocation3 + $0x160] sm:$0xf]
    %v230 = vld [vmem:[#allocation3 + $0x164] sm:$0xf]
    %v231 = vld [vmem:[#allocation3 + $0x168] sm:$0xf]
    %v232 = vld [vmem:[#allocation3 + $0x16c] sm:$0xf]
    %v233 = vld [vmem:[#allocation3 + $0x170] sm:$0xf]
    %v234 = vld [vmem:[#allocation3 + $0x174] sm:$0xf]
    %v235 = vld [vmem:[#allocation3 + $0x178] sm:$0xf]
    %v236 = vld [vmem:[#allocation3 + $0x17c] sm:$0xf]
    %v237 = vld [vmem:[#allocation3 + $0x180] sm:$0xf]
    %v238 = vld [vmem:[#allocation3 + $0x184] sm:$0xf]
    %v239 = vld [vmem:[#allocation3 + $0x188] sm:$0xf]
    %v240 = vld [vmem:[#allocation3 + $0x18c] sm:$0xf]
    %v241 = vld [vmem:[#allocation3 + $0x190] sm:$0xf]
    %v242 = vld [vmem:[#allocation3 + $0x194] sm:$0xf]
    %v243 = vld [vmem:[#allocation3 + $0x198] sm:$0xf]
    %v244 = vld [vmem:[#allocation3 + $0x19c] sm:$0xf]
    %v245 = vld [vmem:[#allocation3 + $0x1a0] sm:$0xf]
    %v246 = vld [vmem:[#allocation3 + $0x1a4] sm:$0xf]
    %v247 = vld [vmem:[#allocation3 + $0x1a8] sm:$0xf]
    %v248 = vld [vmem:[#allocation3 + $0x1ac] sm:$0xf]
    %v249 = vld [vmem:[#allocation3 + $0x1b0] sm:$0xf]
    %v250 = vld [vmem:[#allocation3 + $0x1b4] sm:$0xf]
    %v251 = vld [vmem:[#allocation3 + $0x1b8] sm:$0xf]
    %v252 = vld [vmem:[#allocation3 + $0x1bc] sm:$0xf]
    %v253 = vld [vmem:[#allocation3 + $0x1c0] sm:$0xf]
    %v254 = vld [vmem:[#allocation3 + $0x1c4] sm:$0xf]
    %v255 = vld [vmem:[#allocation3 + $0x1c8] sm:$0xf]
    %v256 = vld [vmem:[#allocation3 + $0x1cc] sm:$0xf]
    %v257 = vld [vmem:[#allocation3 + $0x1d0] sm:$0xf]
    %v258 = vld [vmem:[#allocation3 + $0x1d4] sm:$0xf]
    %v259 = vld [vmem:[#allocation3 + $0x1d8] sm:$0xf]
    %v260 = vld [vmem:[#allocation3 + $0x1dc] sm:$0xf]
    %v261 = vld [vmem:[#allocation3 + $0x1e0] sm:$0xf]
    %v262 = vld [vmem:[#allocation3 + $0x1e4] sm:$0xf]
    %v263 = vld [vmem:[#allocation3 + $0x1e8] sm:$0xf]
    %v264 = vld [vmem:[#allocation3 + $0x1ec] sm:$0xf]
    %v265 = vld [vmem:[#allocation3 + $0x1f0] sm:$0xf]
    %v266 = vld [vmem:[#allocation3 + $0x1f4] sm:$0xf]
    %v267 = vld [vmem:[#allocation3 + $0x1f8] sm:$0xf]
    %v268 = vld [vmem:[#allocation3 + $0x1fc] sm:$0xf]
    %v269 = vld [vmem:[#allocation3 + $0x200] sm:$0xf]
    %v270 = vld [vmem:[#allocation3 + $0x204] sm:$0xf]
    %v271 = vld [vmem:[#allocation3 + $0x208] sm:$0xf]
    %v272 = vld [vmem:[#allocation3 + $0x20c] sm:$0xf]
    %v273 = vld [vmem:[#allocation3 + $0x210] sm:$0xf]
    %v274 = vld [vmem:[#allocation3 + $0x214] sm:$0xf]
    %v275 = vld [vmem:[#allocation3 + $0x218] sm:$0xf]
    %v276 = vld [vmem:[#allocation3 + $0x21c] sm:$0xf]
    %v277 = vld [vmem:[#allocation3 + $0x220] sm:$0xf]
    %v278 = vld [vmem:[#allocation3 + $0x224] sm:$0xf]
    %v279 = vld [vmem:[#allocation3 + $0x228] sm:$0xf]
    %v280 = vld [vmem:[#allocation3 + $0x22c] sm:$0xf]
    %v281 = vld [vmem:[#allocation3 + $0x230] sm:$0xf]
    %v282 = vld [vmem:[#allocation3 + $0x234] sm:$0xf]
    %v283 = vld [vmem:[#allocation3 + $0x238] sm:$0xf]
    %v284 = vld [vmem:[#allocation3 + $0x23c] sm:$0xf]
    %v285 = vld [vmem:[#allocation3 + $0x240] sm:$0xf]
    %v286 = vld [vmem:[#allocation3 + $0x244] sm:$0xf]
    %v287 = vld [vmem:[#allocation3 + $0x248] sm:$0xf]
    %v288 = vld [vmem:[#allocation3 + $0x24c] sm:$0xf]
    %v289 = vld [vmem:[#allocation3 + $0x250] sm:$0xf]
    %v290 = vld [vmem:[#allocation3 + $0x254] sm:$0xf]
    %v291 = vld [vmem:[#allocation3 + $0x258] sm:$0xf]
    %v292 = vld [vmem:[#allocation3 + $0x25c] sm:$0xf]
    %v293 = vld [vmem:[#allocation3 + $0x260] sm:$0xf]
    %v294 = vld [vmem:[#allocation3 + $0x264] sm:$0xf]
    %v295 = vld [vmem:[#allocation3 + $0x268] sm:$0xf]
    %v296 = vld [vmem:[#allocation3 + $0x26c] sm:$0xf]
    %v297 = vld [vmem:[#allocation3 + $0x270] sm:$0xf]
    %v298 = vld [vmem:[#allocation3 + $0x274] sm:$0xf]
    %v299 = vld [vmem:[#allocation3 + $0x278] sm:$0xf]
    %v300 = vld [vmem:[#allocation3 + $0x27c] sm:$0xf]
    %v301 = vld [vmem:[#allocation3 + $0x280] sm:$0xf]
    %v302 = vld [vmem:[#allocation3 + $0x284] sm:$0xf]
    %v303 = vld [vmem:[#allocation3 + $0x288] sm:$0xf]
    %v304 = vld [vmem:[#allocation3 + $0x28c] sm:$0xf]
    %v305 = vld [vmem:[#allocation3 + $0x290] sm:$0xf]
    %v306 = vld [vmem:[#allocation3 + $0x294] sm:$0xf]
    %v307 = vld [vmem:[#allocation3 + $0x298] sm:$0xf]
    %v308 = vld [vmem:[#allocation3 + $0x29c] sm:$0xf]
    %v309 = vld [vmem:[#allocation3 + $0x2a0] sm:$0xf]
    %v310 = vld [vmem:[#allocation3 + $0x2a4] sm:$0xf]
    %v311 = vld [vmem:[#allocation3 + $0x2a8] sm:$0xf]
    %v312 = vld [vmem:[#allocation3 + $0x2ac] sm:$0xf]
    %v313 = vld [vmem:[#allocation3 + $0x2b0] sm:$0xf]
    %v314 = vld [vmem:[#allocation3 + $0x2b4] sm:$0xf]
    %v315 = vld [vmem:[#allocation3 + $0x2b8] sm:$0xf]
    %v316 = vld [vmem:[#allocation3 + $0x2bc] sm:$0xf]
    %v317 = vld [vmem:[#allocation3 + $0x2c0] sm:$0xf]
    %v318 = vld [vmem:[#allocation3 + $0x2c4] sm:$0xf]
    %v319 = vld [vmem:[#allocation3 + $0x2c8] sm:$0xf]
    %v320 = vld [vmem:[#allocation3 + $0x2cc] sm:$0xf]
    %v321 = vld [vmem:[#allocation3 + $0x2d0] sm:$0xf]
    %v322 = vld [vmem:[#allocation3 + $0x2d4] sm:$0xf]
    %v323 = vld [vmem:[#allocation3 + $0x2d8] sm:$0xf]
    %v324 = vld [vmem:[#allocation3 + $0x2dc] sm:$0xf]
    %v325 = vld [vmem:[#allocation3 + $0x2e0] sm:$0xf]
    %v326 = vld [vmem:[#allocation3 + $0x2e4] sm:$0xf]
    %v327 = vld [vmem:[#allocation3 + $0x2e8] sm:$0xf]
    %v328 = vld [vmem:[#allocation3 + $0x2ec] sm:$0xf]
    %v329 = vld [vmem:[#allocation3 + $0x2f0] sm:$0xf]
    %v330 = vld [vmem:[#allocation3 + $0x2f4] sm:$0xf]
    %v331 = vld [vmem:[#allocation3 + $0x2f8] sm:$0xf]
    %v332 = vld [vmem:[#allocation3 + $0x2fc] sm:$0xf]
    %v333 = vld [vmem:[#allocation3 + $0x300] sm:$0xf]
    %v334 = vld [vmem:[#allocation3 + $0x304] sm:$0xf]
    %v335 = vld [vmem:[#allocation3 + $0x308] sm:$0xf]
    %v336 = vld [vmem:[#allocation3 + $0x30c] sm:$0xf]
    %v337 = vld [vmem:[#allocation3 + $0x310] sm:$0xf]
    %v338 = vld [vmem:[#allocation3 + $0x314] sm:$0xf]
    %v339 = vld [vmem:[#allocation3 + $0x318] sm:$0xf]
    %v340 = vld [vmem:[#allocation3 + $0x31c] sm:$0xf]
    %v341 = vld [vmem:[#allocation3 + $0x320] sm:$0xf]
    %v342 = vld [vmem:[#allocation3 + $0x324] sm:$0xf]
    %v343 = vld [vmem:[#allocation3 + $0x328] sm:$0xf]
    %v344 = vld [vmem:[#allocation3 + $0x32c] sm:$0xf]
    %v345 = vld [vmem:[#allocation3 + $0x330] sm:$0xf]
    %v346 = vld [vmem:[#allocation3 + $0x334] sm:$0xf]
    %v347 = vld [vmem:[#allocation3 + $0x338] sm:$0xf]
    %v348 = vld [vmem:[#allocation3 + $0x33c] sm:$0xf]
    %v349 = vld [vmem:[#allocation3 + $0x340] sm:$0xf]
    %v350 = vld [vmem:[#allocation3 + $0x344] sm:$0xf]
    %v351 = vld [vmem:[#allocation3 + $0x348] sm:$0xf]
    %v352 = vld [vmem:[#allocation3 + $0x34c] sm:$0xf]
    %v353 = vld [vmem:[#allocation3 + $0x350] sm:$0xf]
    %v354 = vld [vmem:[#allocation3 + $0x354] sm:$0xf]
    %v355 = vld [vmem:[#allocation3 + $0x358] sm:$0xf]
    %v356 = vld [vmem:[#allocation3 + $0x35c] sm:$0xf]
    %v357 = vld [vmem:[#allocation3 + $0x360] sm:$0xf]
    %v358 = vld [vmem:[#allocation3 + $0x364] sm:$0xf]
    %v359 = vld [vmem:[#allocation3 + $0x368] sm:$0xf]
    %v360 = vld [vmem:[#allocation3 + $0x36c] sm:$0xf]
    %v361 = vld [vmem:[#allocation3 + $0x370] sm:$0xf]
    %v362 = vld [vmem:[#allocation3 + $0x374] sm:$0xf]
    %v363 = vld [vmem:[#allocation3 + $0x378] sm:$0xf]
    %v364 = vld [vmem:[#allocation3 + $0x37c] sm:$0xf]
    %v365 = vld [vmem:[#allocation3 + $0x380] sm:$0xf]
    %v366 = vld [vmem:[#allocation3 + $0x384] sm:$0xf]
    %v367 = vld [vmem:[#allocation3 + $0x388] sm:$0xf]
    %v368 = vld [vmem:[#allocation3 + $0x38c] sm:$0xf]
    %v369 = vld [vmem:[#allocation3 + $0x390] sm:$0xf]
    %v370 = vld [vmem:[#allocation3 + $0x394] sm:$0xf]
    %v371 = vld [vmem:[#allocation3 + $0x398] sm:$0xf]
    %v372 = vld [vmem:[#allocation3 + $0x39c] sm:$0xf]
    %v373 = vld [vmem:[#allocation3 + $0x3a0] sm:$0xf]
    %v374 = vld [vmem:[#allocation3 + $0x3a4] sm:$0xf]
    %v375 = vld [vmem:[#allocation3 + $0x3a8] sm:$0xf]
    %v376 = vld [vmem:[#allocation3 + $0x3ac] sm:$0xf]
    %v377 = vld [vmem:[#allocation3 + $0x3b0] sm:$0xf]
    %v378 = vld [vmem:[#allocation3 + $0x3b4] sm:$0xf]
    %v379 = vld [vmem:[#allocation3 + $0x3b8] sm:$0xf]
    %v380 = vld [vmem:[#allocation3 + $0x3bc] sm:$0xf]
    %v381 = vld [vmem:[#allocation3 + $0x3c0] sm:$0xf]
    %v382 = vld [vmem:[#allocation3 + $0x3c4] sm:$0xf]
    %v383 = vld [vmem:[#allocation3 + $0x3c8] sm:$0xf]
    %v384 = vld [vmem:[#allocation3 + $0x3cc] sm:$0xf]
    %v385 = vld [vmem:[#allocation3 + $0x3d0] sm:$0xf]
    %v386 = vld [vmem:[#allocation3 + $0x3d4] sm:$0xf]
    %v387 = vld [vmem:[#allocation3 + $0x3d8] sm:$0xf]
    %v388 = vld [vmem:[#allocation3 + $0x3dc] sm:$0xf]
    %v389 = vld [vmem:[#allocation3 + $0x3e0] sm:$0xf]
    %v390 = vld [vmem:[#allocation3 + $0x3e4] sm:$0xf]
    %v391 = vld [vmem:[#allocation3 + $0x3e8] sm:$0xf]
    %v392 = vld [vmem:[#allocation3 + $0x3ec] sm:$0xf]
    %v393 = vld [vmem:[#allocation3 + $0x3f0] sm:$0xf]
    %v394 = vld [vmem:[#allocation3 + $0x3f4] sm:$0xf]
    %v395 = vld [vmem:[#allocation3 + $0x3f8] sm:$0xf]
    %v396 = vld [vmem:[#allocation3 + $0x3fc] sm:$0xf]
    %v397 = vunpack.c.l.bf16 %v141
    %v398 = vunpack.c.l.bf16 %v142
    %v399 = vunpack.c.l.bf16 %v143
    %v400 = vunpack.c.l.bf16 %v144
    %v401 = vunpack.c.l.bf16 %v145
    %v402 = vunpack.c.l.bf16 %v146
    %v403 = vunpack.c.l.bf16 %v147
    %v404 = vunpack.c.l.bf16 %v148
    %v405 = vunpack.c.l.bf16 %v149
    %v406 = vunpack.c.l.bf16 %v150
    %v407 = vunpack.c.l.bf16 %v151
    %v408 = vunpack.c.l.bf16 %v152
    %v409 = vunpack.c.l.bf16 %v153
    %v410 = vunpack.c.l.bf16 %v154
    %v411 = vunpack.c.l.bf16 %v155
    %v412 = vunpack.c.l.bf16 %v156
    %v413 = vunpack.c.l.bf16 %v157
    %v414 = vunpack.c.l.bf16 %v158
    %v415 = vunpack.c.l.bf16 %v159
    %v416 = vunpack.c.l.bf16 %v160
    %v417 = vunpack.c.l.bf16 %v161
    %v418 = vunpack.c.l.bf16 %v162
    %v419 = vunpack.c.l.bf16 %v163
    %v420 = vunpack.c.l.bf16 %v164
    %v421 = vunpack.c.l.bf16 %v165
    %v422 = vunpack.c.l.bf16 %v166
    %v423 = vunpack.c.l.bf16 %v167
    %v424 = vunpack.c.l.bf16 %v168
    %v425 = vunpack.c.l.bf16 %v169
    %v426 = vunpack.c.l.bf16 %v170
    %v427 = vunpack.c.l.bf16 %v171
    %v428 = vunpack.c.l.bf16 %v172
    %v429 = vunpack.c.l.bf16 %v173
    %v430 = vunpack.c.l.bf16 %v174
    %v431 = vunpack.c.l.bf16 %v175
    %v432 = vunpack.c.l.bf16 %v176
    %v433 = vunpack.c.l.bf16 %v177
    %v434 = vunpack.c.l.bf16 %v178
    %v435 = vunpack.c.l.bf16 %v179
    %v436 = vunpack.c.l.bf16 %v180
    %v437 = vunpack.c.l.bf16 %v181
    %v438 = vunpack.c.l.bf16 %v182
    %v439 = vunpack.c.l.bf16 %v183
    %v440 = vunpack.c.l.bf16 %v184
    %v441 = vunpack.c.l.bf16 %v185
    %v442 = vunpack.c.l.bf16 %v186
    %v443 = vunpack.c.l.bf16 %v187
    %v444 = vunpack.c.l.bf16 %v188
    %v445 = vunpack.c.l.bf16 %v189
    %v446 = vunpack.c.l.bf16 %v190
    %v447 = vunpack.c.l.bf16 %v191
    %v448 = vunpack.c.l.bf16 %v192
    %v449 = vunpack.c.l.bf16 %v193
    %v450 = vunpack.c.l.bf16 %v194
    %v451 = vunpack.c.l.bf16 %v195
    %v452 = vunpack.c.l.bf16 %v196
    %v453 = vunpack.c.l.bf16 %v197
    %v454 = vunpack.c.l.bf16 %v198
    %v455 = vunpack.c.l.bf16 %v199
    %v456 = vunpack.c.l.bf16 %v200
    %v457 = vunpack.c.l.bf16 %v201
    %v458 = vunpack.c.l.bf16 %v202
    %v459 = vunpack.c.l.bf16 %v203
    %v460 = vunpack.c.l.bf16 %v204
    %v461 = vunpack.c.l.bf16 %v205
    %v462 = vunpack.c.l.bf16 %v206
    %v463 = vunpack.c.l.bf16 %v207
    %v464 = vunpack.c.l.bf16 %v208
    %v465 = vunpack.c.l.bf16 %v209
    %v466 = vunpack.c.l.bf16 %v210
    %v467 = vunpack.c.l.bf16 %v211
    %v468 = vunpack.c.l.bf16 %v212
    %v469 = vunpack.c.l.bf16 %v213
    %v470 = vunpack.c.l.bf16 %v214
    %v471 = vunpack.c.l.bf16 %v215
    %v472 = vunpack.c.l.bf16 %v216
    %v473 = vunpack.c.l.bf16 %v217
    %v474 = vunpack.c.l.bf16 %v218
    %v475 = vunpack.c.l.bf16 %v219
    %v476 = vunpack.c.l.bf16 %v220
    %v477 = vunpack.c.l.bf16 %v221
    %v478 = vunpack.c.l.bf16 %v222
    %v479 = vunpack.c.l.bf16 %v223
    %v480 = vunpack.c.l.bf16 %v224
    %v481 = vunpack.c.l.bf16 %v225
    %v482 = vunpack.c.l.bf16 %v226
    %v483 = vunpack.c.l.bf16 %v227
    %v484 = vunpack.c.l.bf16 %v228
    %v485 = vunpack.c.l.bf16 %v229
    %v486 = vunpack.c.l.bf16 %v230
    %v487 = vunpack.c.l.bf16 %v231
    %v488 = vunpack.c.l.bf16 %v232
    %v489 = vunpack.c.l.bf16 %v233
    %v490 = vunpack.c.l.bf16 %v234
    %v491 = vunpack.c.l.bf16 %v235
    %v492 = vunpack.c.l.bf16 %v236
    %v493 = vunpack.c.l.bf16 %v237
    %v494 = vunpack.c.l.bf16 %v238
    %v495 = vunpack.c.l.bf16 %v239
    %v496 = vunpack.c.l.bf16 %v240
    %v497 = vunpack.c.l.bf16 %v241
    %v498 = vunpack.c.l.bf16 %v242
    %v499 = vunpack.c.l.bf16 %v243
    %v500 = vunpack.c.l.bf16 %v244
    %v501 = vunpack.c.l.bf16 %v245
    %v502 = vunpack.c.l.bf16 %v246
    %v503 = vunpack.c.l.bf16 %v247
    %v504 = vunpack.c.l.bf16 %v248
    %v505 = vunpack.c.l.bf16 %v249
    %v506 = vunpack.c.l.bf16 %v250
    %v507 = vunpack.c.l.bf16 %v251
    %v508 = vunpack.c.l.bf16 %v252
    %v509 = vunpack.c.l.bf16 %v253
    %v510 = vunpack.c.l.bf16 %v254
    %v511 = vunpack.c.l.bf16 %v255
    %v512 = vunpack.c.l.bf16 %v256
    %v513 = vunpack.c.l.bf16 %v257
    %v514 = vunpack.c.l.bf16 %v258
    %v515 = vunpack.c.l.bf16 %v259
    %v516 = vunpack.c.l.bf16 %v260
    %v517 = vunpack.c.l.bf16 %v261
    %v518 = vunpack.c.l.bf16 %v262
    %v519 = vunpack.c.l.bf16 %v263
    %v520 = vunpack.c.l.bf16 %v264
    %v521 = vunpack.c.l.bf16 %v265
    %v522 = vunpack.c.l.bf16 %v266
    %v523 = vunpack.c.l.bf16 %v267
    %v524 = vunpack.c.l.bf16 %v268
    %v525 = vunpack.c.l.bf16 %v269
    %v526 = vunpack.c.l.bf16 %v270
    %v527 = vunpack.c.l.bf16 %v271
    %v528 = vunpack.c.l.bf16 %v272
    %v529 = vunpack.c.l.bf16 %v273
    %v530 = vunpack.c.l.bf16 %v274
    %v531 = vunpack.c.l.bf16 %v275
    %v532 = vunpack.c.l.bf16 %v276
    %v533 = vunpack.c.l.bf16 %v277
    %v534 = vunpack.c.l.bf16 %v278
    %v535 = vunpack.c.l.bf16 %v279
    %v536 = vunpack.c.l.bf16 %v280
    %v537 = vunpack.c.l.bf16 %v281
    %v538 = vunpack.c.l.bf16 %v282
    %v539 = vunpack.c.l.bf16 %v283
    %v540 = vunpack.c.l.bf16 %v284
    %v541 = vunpack.c.l.bf16 %v285
    %v542 = vunpack.c.l.bf16 %v286
    %v543 = vunpack.c.l.bf16 %v287
    %v544 = vunpack.c.l.bf16 %v288
    %v545 = vunpack.c.l.bf16 %v289
    %v546 = vunpack.c.l.bf16 %v290
    %v547 = vunpack.c.l.bf16 %v291
    %v548 = vunpack.c.l.bf16 %v292
    %v549 = vunpack.c.l.bf16 %v293
    %v550 = vunpack.c.l.bf16 %v294
    %v551 = vunpack.c.l.bf16 %v295
    %v552 = vunpack.c.l.bf16 %v296
    %v553 = vunpack.c.l.bf16 %v297
    %v554 = vunpack.c.l.bf16 %v298
    %v555 = vunpack.c.l.bf16 %v299
    %v556 = vunpack.c.l.bf16 %v300
    %v557 = vunpack.c.l.bf16 %v301
    %v558 = vunpack.c.l.bf16 %v302
    %v559 = vunpack.c.l.bf16 %v303
    %v560 = vunpack.c.l.bf16 %v304
    %v561 = vunpack.c.l.bf16 %v305
    %v562 = vunpack.c.l.bf16 %v306
    %v563 = vunpack.c.l.bf16 %v307
    %v564 = vunpack.c.l.bf16 %v308
    %v565 = vunpack.c.l.bf16 %v309
    %v566 = vunpack.c.l.bf16 %v310
    %v567 = vunpack.c.l.bf16 %v311
    %v568 = vunpack.c.l.bf16 %v312
    %v569 = vunpack.c.l.bf16 %v313
    %v570 = vunpack.c.l.bf16 %v314
    %v571 = vunpack.c.l.bf16 %v315
    %v572 = vunpack.c.l.bf16 %v316
    %v573 = vunpack.c.l.bf16 %v317
    %v574 = vunpack.c.l.bf16 %v318
    %v575 = vunpack.c.l.bf16 %v319
    %v576 = vunpack.c.l.bf16 %v320
    %v577 = vunpack.c.l.bf16 %v321
    %v578 = vunpack.c.l.bf16 %v322
    %v579 = vunpack.c.l.bf16 %v323
    %v580 = vunpack.c.l.bf16 %v324
    %v581 = vunpack.c.l.bf16 %v325
    %v582 = vunpack.c.l.bf16 %v326
    %v583 = vunpack.c.l.bf16 %v327
    %v584 = vunpack.c.l.bf16 %v328
    %v585 = vunpack.c.l.bf16 %v329
    %v586 = vunpack.c.l.bf16 %v330
    %v587 = vunpack.c.l.bf16 %v331
    %v588 = vunpack.c.l.bf16 %v332
    %v589 = vunpack.c.l.bf16 %v333
    %v590 = vunpack.c.l.bf16 %v334
    %v591 = vunpack.c.l.bf16 %v335
    %v592 = vunpack.c.l.bf16 %v336
    %v593 = vunpack.c.l.bf16 %v337
    %v594 = vunpack.c.l.bf16 %v338
    %v595 = vunpack.c.l.bf16 %v339
    %v596 = vunpack.c.l.bf16 %v340
    %v597 = vunpack.c.l.bf16 %v341
    %v598 = vunpack.c.l.bf16 %v342
    %v599 = vunpack.c.l.bf16 %v343
    %v600 = vunpack.c.l.bf16 %v344
    %v601 = vunpack.c.l.bf16 %v345
    %v602 = vunpack.c.l.bf16 %v346
    %v603 = vunpack.c.l.bf16 %v347
    %v604 = vunpack.c.l.bf16 %v348
    %v605 = vunpack.c.l.bf16 %v349
    %v606 = vunpack.c.l.bf16 %v350
    %v607 = vunpack.c.l.bf16 %v351
    %v608 = vunpack.c.l.bf16 %v352
    %v609 = vunpack.c.l.bf16 %v353
    %v610 = vunpack.c.l.bf16 %v354
    %v611 = vunpack.c.l.bf16 %v355
    %v612 = vunpack.c.l.bf16 %v356
    %v613 = vunpack.c.l.bf16 %v357
    %v614 = vunpack.c.l.bf16 %v358
    %v615 = vunpack.c.l.bf16 %v359
    %v616 = vunpack.c.l.bf16 %v360
    %v617 = vunpack.c.l.bf16 %v361
    %v618 = vunpack.c.l.bf16 %v362
    %v619 = vunpack.c.l.bf16 %v363
    %v620 = vunpack.c.l.bf16 %v364
    %v621 = vunpack.c.l.bf16 %v365
    %v622 = vunpack.c.l.bf16 %v366
    %v623 = vunpack.c.l.bf16 %v367
    %v624 = vunpack.c.l.bf16 %v368
    %v625 = vunpack.c.l.bf16 %v369
    %v626 = vunpack.c.l.bf16 %v370
    %v627 = vunpack.c.l.bf16 %v371
    %v628 = vunpack.c.l.bf16 %v372
    %v629 = vunpack.c.l.bf16 %v373
    %v630 = vunpack.c.l.bf16 %v374
    %v631 = vunpack.c.l.bf16 %v375
    %v632 = vunpack.c.l.bf16 %v376
    %v633 = vunpack.c.l.bf16 %v377
    %v634 = vunpack.c.l.bf16 %v378
    %v635 = vunpack.c.l.bf16 %v379
    %v636 = vunpack.c.l.bf16 %v380
    %v637 = vunpack.c.l.bf16 %v381
    %v638 = vunpack.c.l.bf16 %v382
    %v639 = vunpack.c.l.bf16 %v383
    %v640 = vunpack.c.l.bf16 %v384
    %v641 = vunpack.c.l.bf16 %v385
    %v642 = vunpack.c.l.bf16 %v386
    %v643 = vunpack.c.l.bf16 %v387
    %v644 = vunpack.c.l.bf16 %v388
    %v645 = vunpack.c.l.bf16 %v389
    %v646 = vunpack.c.l.bf16 %v390
    %v647 = vunpack.c.l.bf16 %v391
    %v648 = vunpack.c.l.bf16 %v392
    %v649 = vunpack.c.l.bf16 %v393
    %v650 = vunpack.c.l.bf16 %v394
    %v651 = vunpack.c.l.bf16 %v395
    %v652 = vunpack.c.l.bf16 %v396
    %v661 = vcombine.high %v133, %v133
    %v662 = vcombine.high %v134, %v134
    %v663 = vcombine.high %v135, %v135
    %v664 = vcombine.high %v136, %v136
    %v665 = vcombine.high %v137, %v137
    %v666 = vcombine.high %v138, %v138
    %v667 = vcombine.high %v139, %v139
    %v668 = vcombine.high %v140, %v140
    %677 = vmatprep.subr.mxu0 0.0
    %678 = vmatpush1.msra.mxu0 %v397
    %679 = vmatprep.subr.mxu0 0.0
    %680 = vmatpush1.msra.mxu0 %v398
    %681 = vmatprep.subr.mxu0 0.0
    %682 = vmatpush1.msra.mxu0 %v399
    %683 = vmatprep.subr.mxu0 0.0
    %684 = vmatpush1.msra.mxu0 %v400
    %685 = vmatprep.subr.mxu0 0.0
    %686 = vmatpush1.msra.mxu0 %v401
    %687 = vmatprep.subr.mxu0 0.0
    %688 = vmatpush1.msra.mxu0 %v402
    %689 = vmatprep.subr.mxu0 0.0
    %690 = vmatpush1.msra.mxu0 %v403
    %691 = vmatprep.subr.mxu0 0.0
    %692 = vmatpush1.msra.mxu0 %v404
    %693 = vmatprep.subr.mxu0 0.0
    %694 = vmatpush1.msra.mxu0 %v405
    %695 = vmatprep.subr.mxu0 0.0
    %696 = vmatpush1.msra.mxu0 %v406
    %697 = vmatprep.subr.mxu0 0.0
    %698 = vmatpush1.msra.mxu0 %v407
    %699 = vmatprep.subr.mxu0 0.0
    %700 = vmatpush1.msra.mxu0 %v408
    %701 = vmatprep.subr.mxu0 0.0
    %702 = vmatpush1.msra.mxu0 %v409
    %703 = vmatprep.subr.mxu0 0.0
    %704 = vmatpush1.msra.mxu0 %v410
    %705 = vmatprep.subr.mxu0 0.0
    %706 = vmatpush1.msra.mxu0 %v411
    %707 = vmatprep.subr.mxu0 0.0
    %708 = vmatpush1.msra.mxu0 %v412
    %709 = vmatprep.subr.mxu0 0.0
    %710 = vmatpush1.msra.mxu0 %v413
    %711 = vmatprep.subr.mxu0 0.0
    %712 = vmatpush1.msra.mxu0 %v414
    %713 = vmatprep.subr.mxu0 0.0
    %714 = vmatpush1.msra.mxu0 %v415
    %715 = vmatprep.subr.mxu0 0.0
    %716 = vmatpush1.msra.mxu0 %v416
    %717 = vmatprep.subr.mxu0 0.0
    %718 = vmatpush1.msra.mxu0 %v417
    %719 = vmatprep.subr.mxu0 0.0
    %720 = vmatpush1.msra.mxu0 %v418
    %721 = vmatprep.subr.mxu0 0.0
    %722 = vmatpush1.msra.mxu0 %v419
    %723 = vmatprep.subr.mxu0 0.0
    %724 = vmatpush1.msra.mxu0 %v420
    %725 = vmatprep.subr.mxu0 0.0
    %726 = vmatpush1.msra.mxu0 %v421
    %727 = vmatprep.subr.mxu0 0.0
    %728 = vmatpush1.msra.mxu0 %v422
    %729 = vmatprep.subr.mxu0 0.0
    %730 = vmatpush1.msra.mxu0 %v423
    %731 = vmatprep.subr.mxu0 0.0
    %732 = vmatpush1.msra.mxu0 %v424
    %733 = vmatprep.subr.mxu0 0.0
    %734 = vmatpush1.msra.mxu0 %v425
    %735 = vmatprep.subr.mxu0 0.0
    %736 = vmatpush1.msra.mxu0 %v426
    %737 = vmatprep.subr.mxu0 0.0
    %738 = vmatpush1.msra.mxu0 %v427
    %739 = vmatprep.subr.mxu0 0.0
    %740 = vmatpush1.msra.mxu0 %v428
    %741 = vmatprep.mubr.f32.mxu0 %v661
    %742 = vmatmul.mubr.f32.gmra.mrb[0].mxu0 %v133
    %v743 = vpop.f32.mrb[0].mxu0
    %v744 = vadd.f32 0.0, %v743
    %v745 = vpop.f32.mrb[0].mxu0
    %746 = vdwg.mxu0
    %747 = vmatprep.subr.mxu0 0.0
    %748 = vmatpush1.msra.mxu0 %v429
    %749 = vmatprep.subr.mxu0 0.0
    %750 = vmatpush1.msra.mxu0 %v430
    %751 = vmatprep.subr.mxu0 0.0
    %752 = vmatpush1.msra.mxu0 %v431
    %753 = vmatprep.subr.mxu0 0.0
    %754 = vmatpush1.msra.mxu0 %v432
    %755 = vmatprep.subr.mxu0 0.0
    %756 = vmatpush1.msra.mxu0 %v433
    %757 = vmatprep.subr.mxu0 0.0
    %758 = vmatpush1.msra.mxu0 %v434
    %759 = vmatprep.subr.mxu0 0.0
    %760 = vmatpush1.msra.mxu0 %v435
    %761 = vmatprep.subr.mxu0 0.0
    %762 = vmatpush1.msra.mxu0 %v436
    %763 = vmatprep.subr.mxu0 0.0
    %764 = vmatpush1.msra.mxu0 %v437
    %765 = vmatprep.subr.mxu0 0.0
    %766 = vmatpush1.msra.mxu0 %v438
    %767 = vmatprep.subr.mxu0 0.0
    %768 = vmatpush1.msra.mxu0 %v439
    %769 = vmatprep.subr.mxu0 0.0
    %770 = vmatpush1.msra.mxu0 %v440
    %771 = vmatprep.subr.mxu0 0.0
    %772 = vmatpush1.msra.mxu0 %v441
    %773 = vmatprep.subr.mxu0 0.0
    %774 = vmatpush1.msra.mxu0 %v442
    %775 = vmatprep.subr.mxu0 0.0
    %776 = vmatpush1.msra.mxu0 %v443
    %777 = vmatprep.subr.mxu0 0.0
    %778 = vmatpush1.msra.mxu0 %v444
    %779 = vmatprep.subr.mxu0 0.0
    %780 = vmatpush1.msra.mxu0 %v445
    %781 = vmatprep.subr.mxu0 0.0
    %782 = vmatpush1.msra.mxu0 %v446
    %783 = vmatprep.subr.mxu0 0.0
    %784 = vmatpush1.msra.mxu0 %v447
    %785 = vmatprep.subr.mxu0 0.0
    %786 = vmatpush1.msra.mxu0 %v448
    %787 = vmatprep.subr.mxu0 0.0
    %788 = vmatpush1.msra.mxu0 %v449
    %789 = vmatprep.subr.mxu0 0.0
    %790 = vmatpush1.msra.mxu0 %v450
    %791 = vmatprep.subr.mxu0 0.0
    %792 = vmatpush1.msra.mxu0 %v451
    %793 = vmatprep.subr.mxu0 0.0
    %794 = vmatpush1.msra.mxu0 %v452
    %795 = vmatprep.subr.mxu0 0.0
    %796 = vmatpush1.msra.mxu0 %v453
    %797 = vmatprep.subr.mxu0 0.0
    %798 = vmatpush1.msra.mxu0 %v454
    %799 = vmatprep.subr.mxu0 0.0
    %800 = vmatpush1.msra.mxu0 %v455
    %801 = vmatprep.subr.mxu0 0.0
    %802 = vmatpush1.msra.mxu0 %v456
    %803 = vmatprep.subr.mxu0 0.0
    %804 = vmatpush1.msra.mxu0 %v457
    %805 = vmatprep.subr.mxu0 0.0
    %806 = vmatpush1.msra.mxu0 %v458
    %807 = vmatprep.subr.mxu0 0.0
    %808 = vmatpush1.msra.mxu0 %v459
    %809 = vmatprep.subr.mxu0 0.0
    %810 = vmatpush1.msra.mxu0 %v460
    %811 = vmatprep.mubr.f32.mxu0 %v662
    %812 = vmatmul.mubr.f32.gmra.mrb[0].mxu0 %v134
    %v813 = vpop.f32.mrb[0].mxu0
    %v814 = vadd.f32 %v744, %v813
    %v815 = vpop.f32.mrb[0].mxu0
    %816 = vdwg.mxu0
    %817 = vmatprep.subr.mxu0 0.0
    %818 = vmatpush1.msra.mxu0 %v461
    %819 = vmatprep.subr.mxu0 0.0
    %820 = vmatpush1.msra.mxu0 %v462
    %821 = vmatprep.subr.mxu0 0.0
    %822 = vmatpush1.msra.mxu0 %v463
    %823 = vmatprep.subr.mxu0 0.0
    %824 = vmatpush1.msra.mxu0 %v464
    %825 = vmatprep.subr.mxu0 0.0
    %826 = vmatpush1.msra.mxu0 %v465
    %827 = vmatprep.subr.mxu0 0.0
    %828 = vmatpush1.msra.mxu0 %v466
    %829 = vmatprep.subr.mxu0 0.0
    %830 = vmatpush1.msra.mxu0 %v467
    %831 = vmatprep.subr.mxu0 0.0
    %832 = vmatpush1.msra.mxu0 %v468
    %833 = vmatprep.subr.mxu0 0.0
    %834 = vmatpush1.msra.mxu0 %v469
    %835 = vmatprep.subr.mxu0 0.0
    %836 = vmatpush1.msra.mxu0 %v470
    %837 = vmatprep.subr.mxu0 0.0
    %838 = vmatpush1.msra.mxu0 %v471
    %839 = vmatprep.subr.mxu0 0.0
    %840 = vmatpush1.msra.mxu0 %v472
    %841 = vmatprep.subr.mxu0 0.0
    %842 = vmatpush1.msra.mxu0 %v473
    %843 = vmatprep.subr.mxu0 0.0
    %844 = vmatpush1.msra.mxu0 %v474
    %845 = vmatprep.subr.mxu0 0.0
    %846 = vmatpush1.msra.mxu0 %v475
    %847 = vmatprep.subr.mxu0 0.0
    %848 = vmatpush1.msra.mxu0 %v476
    %849 = vmatprep.subr.mxu0 0.0
    %850 = vmatpush1.msra.mxu0 %v477
    %851 = vmatprep.subr.mxu0 0.0
    %852 = vmatpush1.msra.mxu0 %v478
    %853 = vmatprep.subr.mxu0 0.0
    %854 = vmatpush1.msra.mxu0 %v479
    %855 = vmatprep.subr.mxu0 0.0
    %856 = vmatpush1.msra.mxu0 %v480
    %857 = vmatprep.subr.mxu0 0.0
    %858 = vmatpush1.msra.mxu0 %v481
    %859 = vmatprep.subr.mxu0 0.0
    %860 = vmatpush1.msra.mxu0 %v482
    %861 = vmatprep.subr.mxu0 0.0
    %862 = vmatpush1.msra.mxu0 %v483
    %863 = vmatprep.subr.mxu0 0.0
    %864 = vmatpush1.msra.mxu0 %v484
    %865 = vmatprep.subr.mxu0 0.0
    %866 = vmatpush1.msra.mxu0 %v485
    %867 = vmatprep.subr.mxu0 0.0
    %868 = vmatpush1.msra.mxu0 %v486
    %869 = vmatprep.subr.mxu0 0.0
    %870 = vmatpush1.msra.mxu0 %v487
    %871 = vmatprep.subr.mxu0 0.0
    %872 = vmatpush1.msra.mxu0 %v488
    %873 = vmatprep.subr.mxu0 0.0
    %874 = vmatpush1.msra.mxu0 %v489
    %875 = vmatprep.subr.mxu0 0.0
    %876 = vmatpush1.msra.mxu0 %v490
    %877 = vmatprep.subr.mxu0 0.0
    %878 = vmatpush1.msra.mxu0 %v491
    %879 = vmatprep.subr.mxu0 0.0
    %880 = vmatpush1.msra.mxu0 %v492
    %881 = vmatprep.mubr.f32.mxu0 %v663
    %882 = vmatmul.mubr.f32.gmra.mrb[0].mxu0 %v135
    %v883 = vpop.f32.mrb[0].mxu0
    %v884 = vadd.f32 %v814, %v883
    %v885 = vpop.f32.mrb[0].mxu0
    %886 = vdwg.mxu0
    %887 = vmatprep.subr.mxu0 0.0
    %888 = vmatpush1.msra.mxu0 %v493
    %889 = vmatprep.subr.mxu0 0.0
    %890 = vmatpush1.msra.mxu0 %v494
    %891 = vmatprep.subr.mxu0 0.0
    %892 = vmatpush1.msra.mxu0 %v495
    %893 = vmatprep.subr.mxu0 0.0
    %894 = vmatpush1.msra.mxu0 %v496
    %895 = vmatprep.subr.mxu0 0.0
    %896 = vmatpush1.msra.mxu0 %v497
    %897 = vmatprep.subr.mxu0 0.0
    %898 = vmatpush1.msra.mxu0 %v498
    %899 = vmatprep.subr.mxu0 0.0
    %900 = vmatpush1.msra.mxu0 %v499
    %901 = vmatprep.subr.mxu0 0.0
    %902 = vmatpush1.msra.mxu0 %v500
    %903 = vmatprep.subr.mxu0 0.0
    %904 = vmatpush1.msra.mxu0 %v501
    %905 = vmatprep.subr.mxu0 0.0
    %906 = vmatpush1.msra.mxu0 %v502
    %907 = vmatprep.subr.mxu0 0.0
    %908 = vmatpush1.msra.mxu0 %v503
    %909 = vmatprep.subr.mxu0 0.0
    %910 = vmatpush1.msra.mxu0 %v504
    %911 = vmatprep.subr.mxu0 0.0
    %912 = vmatpush1.msra.mxu0 %v505
    %913 = vmatprep.subr.mxu0 0.0
    %914 = vmatpush1.msra.mxu0 %v506
    %915 = vmatprep.subr.mxu0 0.0
    %916 = vmatpush1.msra.mxu0 %v507
    %917 = vmatprep.subr.mxu0 0.0
    %918 = vmatpush1.msra.mxu0 %v508
    %919 = vmatprep.subr.mxu0 0.0
    %920 = vmatpush1.msra.mxu0 %v509
    %921 = vmatprep.subr.mxu0 0.0
    %922 = vmatpush1.msra.mxu0 %v510
    %923 = vmatprep.subr.mxu0 0.0
    %924 = vmatpush1.msra.mxu0 %v511
    %925 = vmatprep.subr.mxu0 0.0
    %926 = vmatpush1.msra.mxu0 %v512
    %927 = vmatprep.subr.mxu0 0.0
    %928 = vmatpush1.msra.mxu0 %v513
    %929 = vmatprep.subr.mxu0 0.0
    %930 = vmatpush1.msra.mxu0 %v514
    %931 = vmatprep.subr.mxu0 0.0
    %932 = vmatpush1.msra.mxu0 %v515
    %933 = vmatprep.subr.mxu0 0.0
    %934 = vmatpush1.msra.mxu0 %v516
    %935 = vmatprep.subr.mxu0 0.0
    %936 = vmatpush1.msra.mxu0 %v517
    %937 = vmatprep.subr.mxu0 0.0
    %938 = vmatpush1.msra.mxu0 %v518
    %939 = vmatprep.subr.mxu0 0.0
    %940 = vmatpush1.msra.mxu0 %v519
    %941 = vmatprep.subr.mxu0 0.0
    %942 = vmatpush1.msra.mxu0 %v520
    %943 = vmatprep.subr.mxu0 0.0
    %944 = vmatpush1.msra.mxu0 %v521
    %945 = vmatprep.subr.mxu0 0.0
    %946 = vmatpush1.msra.mxu0 %v522
    %947 = vmatprep.subr.mxu0 0.0
    %948 = vmatpush1.msra.mxu0 %v523
    %949 = vmatprep.subr.mxu0 0.0
    %950 = vmatpush1.msra.mxu0 %v524
    %951 = vmatprep.mubr.f32.mxu0 %v664
    %952 = vmatmul.mubr.f32.gmra.mrb[0].mxu0 %v136
    %v953 = vpop.f32.mrb[0].mxu0
    %v954 = vadd.f32 %v884, %v953
    %v955 = vpop.f32.mrb[0].mxu0
    %956 = vdwg.mxu0
    %957 = vmatprep.subr.mxu0 0.0
    %958 = vmatpush1.msra.mxu0 %v525
    %959 = vmatprep.subr.mxu0 0.0
    %960 = vmatpush1.msra.mxu0 %v526
    %961 = vmatprep.subr.mxu0 0.0
    %962 = vmatpush1.msra.mxu0 %v527
    %963 = vmatprep.subr.mxu0 0.0
    %964 = vmatpush1.msra.mxu0 %v528
    %965 = vmatprep.subr.mxu0 0.0
    %966 = vmatpush1.msra.mxu0 %v529
    %967 = vmatprep.subr.mxu0 0.0
    %968 = vmatpush1.msra.mxu0 %v530
    %969 = vmatprep.subr.mxu0 0.0
    %970 = vmatpush1.msra.mxu0 %v531
    %971 = vmatprep.subr.mxu0 0.0
    %972 = vmatpush1.msra.mxu0 %v532
    %973 = vmatprep.subr.mxu0 0.0
    %974 = vmatpush1.msra.mxu0 %v533
    %975 = vmatprep.subr.mxu0 0.0
    %976 = vmatpush1.msra.mxu0 %v534
    %977 = vmatprep.subr.mxu0 0.0
    %978 = vmatpush1.msra.mxu0 %v535
    %979 = vmatprep.subr.mxu0 0.0
    %980 = vmatpush1.msra.mxu0 %v536
    %981 = vmatprep.subr.mxu0 0.0
    %982 = vmatpush1.msra.mxu0 %v537
    %983 = vmatprep.subr.mxu0 0.0
    %984 = vmatpush1.msra.mxu0 %v538
    %985 = vmatprep.subr.mxu0 0.0
    %986 = vmatpush1.msra.mxu0 %v539
    %987 = vmatprep.subr.mxu0 0.0
    %988 = vmatpush1.msra.mxu0 %v540
    %989 = vmatprep.subr.mxu0 0.0
    %990 = vmatpush1.msra.mxu0 %v541
    %991 = vmatprep.subr.mxu0 0.0
    %992 = vmatpush1.msra.mxu0 %v542
    %993 = vmatprep.subr.mxu0 0.0
    %994 = vmatpush1.msra.mxu0 %v543
    %995 = vmatprep.subr.mxu0 0.0
    %996 = vmatpush1.msra.mxu0 %v544
    %997 = vmatprep.subr.mxu0 0.0
    %998 = vmatpush1.msra.mxu0 %v545
    %999 = vmatprep.subr.mxu0 0.0
    %1000 = vmatpush1.msra.mxu0 %v546
    %1001 = vmatprep.subr.mxu0 0.0
    %1002 = vmatpush1.msra.mxu0 %v547
    %1003 = vmatprep.subr.mxu0 0.0
    %1004 = vmatpush1.msra.mxu0 %v548
    %1005 = vmatprep.subr.mxu0 0.0
    %1006 = vmatpush1.msra.mxu0 %v549
    %1007 = vmatprep.subr.mxu0 0.0
    %1008 = vmatpush1.msra.mxu0 %v550
    %1009 = vmatprep.subr.mxu0 0.0
    %1010 = vmatpush1.msra.mxu0 %v551
    %1011 = vmatprep.subr.mxu0 0.0
    %1012 = vmatpush1.msra.mxu0 %v552
    %1013 = vmatprep.subr.mxu0 0.0
    %1014 = vmatpush1.msra.mxu0 %v553
    %1015 = vmatprep.subr.mxu0 0.0
    %1016 = vmatpush1.msra.mxu0 %v554
    %1017 = vmatprep.subr.mxu0 0.0
    %1018 = vmatpush1.msra.mxu0 %v555
    %1019 = vmatprep.subr.mxu0 0.0
    %1020 = vmatpush1.msra.mxu0 %v556
    %1021 = vmatprep.mubr.f32.mxu0 %v665
    %1022 = vmatmul.mubr.f32.gmra.mrb[0].mxu0 %v137
    %v1023 = vpop.f32.mrb[0].mxu0
    %v1024 = vadd.f32 %v954, %v1023
    %v1025 = vpop.f32.mrb[0].mxu0
    %1026 = vdwg.mxu0
    %1027 = vmatprep.subr.mxu0 0.0
    %1028 = vmatpush1.msra.mxu0 %v557
    %1029 = vmatprep.subr.mxu0 0.0
    %1030 = vmatpush1.msra.mxu0 %v558
    %1031 = vmatprep.subr.mxu0 0.0
    %1032 = vmatpush1.msra.mxu0 %v559
    %1033 = vmatprep.subr.mxu0 0.0
    %1034 = vmatpush1.msra.mxu0 %v560
    %1035 = vmatprep.subr.mxu0 0.0
    %1036 = vmatpush1.msra.mxu0 %v561
    %1037 = vmatprep.subr.mxu0 0.0
    %1038 = vmatpush1.msra.mxu0 %v562
    %1039 = vmatprep.subr.mxu0 0.0
    %1040 = vmatpush1.msra.mxu0 %v563
    %1041 = vmatprep.subr.mxu0 0.0
    %1042 = vmatpush1.msra.mxu0 %v564
    %1043 = vmatprep.subr.mxu0 0.0
    %1044 = vmatpush1.msra.mxu0 %v565
    %1045 = vmatprep.subr.mxu0 0.0
    %1046 = vmatpush1.msra.mxu0 %v566
    %1047 = vmatprep.subr.mxu0 0.0
    %1048 = vmatpush1.msra.mxu0 %v567
    %1049 = vmatprep.subr.mxu0 0.0
    %1050 = vmatpush1.msra.mxu0 %v568
    %1051 = vmatprep.subr.mxu0 0.0
    %1052 = vmatpush1.msra.mxu0 %v569
    %1053 = vmatprep.subr.mxu0 0.0
    %1054 = vmatpush1.msra.mxu0 %v570
    %1055 = vmatprep.subr.mxu0 0.0
    %1056 = vmatpush1.msra.mxu0 %v571
    %1057 = vmatprep.subr.mxu0 0.0
    %1058 = vmatpush1.msra.mxu0 %v572
    %1059 = vmatprep.subr.mxu0 0.0
    %1060 = vmatpush1.msra.mxu0 %v573
    %1061 = vmatprep.subr.mxu0 0.0
    %1062 = vmatpush1.msra.mxu0 %v574
    %1063 = vmatprep.subr.mxu0 0.0
    %1064 = vmatpush1.msra.mxu0 %v575
    %1065 = vmatprep.subr.mxu0 0.0
    %1066 = vmatpush1.msra.mxu0 %v576
    %1067 = vmatprep.subr.mxu0 0.0
    %1068 = vmatpush1.msra.mxu0 %v577
    %1069 = vmatprep.subr.mxu0 0.0
    %1070 = vmatpush1.msra.mxu0 %v578
    %1071 = vmatprep.subr.mxu0 0.0
    %1072 = vmatpush1.msra.mxu0 %v579
    %1073 = vmatprep.subr.mxu0 0.0
    %1074 = vmatpush1.msra.mxu0 %v580
    %1075 = vmatprep.subr.mxu0 0.0
    %1076 = vmatpush1.msra.mxu0 %v581
    %1077 = vmatprep.subr.mxu0 0.0
    %1078 = vmatpush1.msra.mxu0 %v582
    %1079 = vmatprep.subr.mxu0 0.0
    %1080 = vmatpush1.msra.mxu0 %v583
    %1081 = vmatprep.subr.mxu0 0.0
    %1082 = vmatpush1.msra.mxu0 %v584
    %1083 = vmatprep.subr.mxu0 0.0
    %1084 = vmatpush1.msra.mxu0 %v585
    %1085 = vmatprep.subr.mxu0 0.0
    %1086 = vmatpush1.msra.mxu0 %v586
    %1087 = vmatprep.subr.mxu0 0.0
    %1088 = vmatpush1.msra.mxu0 %v587
    %1089 = vmatprep.subr.mxu0 0.0
    %1090 = vmatpush1.msra.mxu0 %v588
    %1091 = vmatprep.mubr.f32.mxu0 %v666
    %1092 = vmatmul.mubr.f32.gmra.mrb[0].mxu0 %v138
    %v1093 = vpop.f32.mrb[0].mxu0
    %v1094 = vadd.f32 %v1024, %v1093
    %v1095 = vpop.f32.mrb[0].mxu0
    %1096 = vdwg.mxu0
    %1097 = vmatprep.subr.mxu0 0.0
    %1098 = vmatpush1.msra.mxu0 %v589
    %1099 = vmatprep.subr.mxu0 0.0
    %1100 = vmatpush1.msra.mxu0 %v590
    %1101 = vmatprep.subr.mxu0 0.0
    %1102 = vmatpush1.msra.mxu0 %v591
    %1103 = vmatprep.subr.mxu0 0.0
    %1104 = vmatpush1.msra.mxu0 %v592
    %1105 = vmatprep.subr.mxu0 0.0
    %1106 = vmatpush1.msra.mxu0 %v593
    %1107 = vmatprep.subr.mxu0 0.0
    %1108 = vmatpush1.msra.mxu0 %v594
    %1109 = vmatprep.subr.mxu0 0.0
    %1110 = vmatpush1.msra.mxu0 %v595
    %1111 = vmatprep.subr.mxu0 0.0
    %1112 = vmatpush1.msra.mxu0 %v596
    %1113 = vmatprep.subr.mxu0 0.0
    %1114 = vmatpush1.msra.mxu0 %v597
    %1115 = vmatprep.subr.mxu0 0.0
    %1116 = vmatpush1.msra.mxu0 %v598
    %1117 = vmatprep.subr.mxu0 0.0
    %1118 = vmatpush1.msra.mxu0 %v599
    %1119 = vmatprep.subr.mxu0 0.0
    %1120 = vmatpush1.msra.mxu0 %v600
    %1121 = vmatprep.subr.mxu0 0.0
    %1122 = vmatpush1.msra.mxu0 %v601
    %1123 = vmatprep.subr.mxu0 0.0
    %1124 = vmatpush1.msra.mxu0 %v602
    %1125 = vmatprep.subr.mxu0 0.0
    %1126 = vmatpush1.msra.mxu0 %v603
    %1127 = vmatprep.subr.mxu0 0.0
    %1128 = vmatpush1.msra.mxu0 %v604
    %1129 = vmatprep.subr.mxu0 0.0
    %1130 = vmatpush1.msra.mxu0 %v605
    %1131 = vmatprep.subr.mxu0 0.0
    %1132 = vmatpush1.msra.mxu0 %v606
    %1133 = vmatprep.subr.mxu0 0.0
    %1134 = vmatpush1.msra.mxu0 %v607
    %1135 = vmatprep.subr.mxu0 0.0
    %1136 = vmatpush1.msra.mxu0 %v608
    %1137 = vmatprep.subr.mxu0 0.0
    %1138 = vmatpush1.msra.mxu0 %v609
    %1139 = vmatprep.subr.mxu0 0.0
    %1140 = vmatpush1.msra.mxu0 %v610
    %1141 = vmatprep.subr.mxu0 0.0
    %1142 = vmatpush1.msra.mxu0 %v611
    %1143 = vmatprep.subr.mxu0 0.0
    %1144 = vmatpush1.msra.mxu0 %v612
    %1145 = vmatprep.subr.mxu0 0.0
    %1146 = vmatpush1.msra.mxu0 %v613
    %1147 = vmatprep.subr.mxu0 0.0
    %1148 = vmatpush1.msra.mxu0 %v614
    %1149 = vmatprep.subr.mxu0 0.0
    %1150 = vmatpush1.msra.mxu0 %v615
    %1151 = vmatprep.subr.mxu0 0.0
    %1152 = vmatpush1.msra.mxu0 %v616
    %1153 = vmatprep.subr.mxu0 0.0
    %1154 = vmatpush1.msra.mxu0 %v617
    %1155 = vmatprep.subr.mxu0 0.0
    %1156 = vmatpush1.msra.mxu0 %v618
    %1157 = vmatprep.subr.mxu0 0.0
    %1158 = vmatpush1.msra.mxu0 %v619
    %1159 = vmatprep.subr.mxu0 0.0
    %1160 = vmatpush1.msra.mxu0 %v620
    %1161 = vmatprep.mubr.f32.mxu0 %v667
    %1162 = vmatmul.mubr.f32.gmra.mrb[0].mxu0 %v139
    %v1163 = vpop.f32.mrb[0].mxu0
    %v1164 = vadd.f32 %v1094, %v1163
    %v1165 = vpop.f32.mrb[0].mxu0
    %1166 = vdwg.mxu0
    %1167 = vmatprep.subr.mxu0 0.0
    %1168 = vmatpush1.msra.mxu0 %v621
    %1169 = vmatprep.subr.mxu0 0.0
    %1170 = vmatpush1.msra.mxu0 %v622
    %1171 = vmatprep.subr.mxu0 0.0
    %1172 = vmatpush1.msra.mxu0 %v623
    %1173 = vmatprep.subr.mxu0 0.0
    %1174 = vmatpush1.msra.mxu0 %v624
    %1175 = vmatprep.subr.mxu0 0.0
    %1176 = vmatpush1.msra.mxu0 %v625
    %1177 = vmatprep.subr.mxu0 0.0
    %1178 = vmatpush1.msra.mxu0 %v626
    %1179 = vmatprep.subr.mxu0 0.0
    %1180 = vmatpush1.msra.mxu0 %v627
    %1181 = vmatprep.subr.mxu0 0.0
    %1182 = vmatpush1.msra.mxu0 %v628
    %1183 = vmatprep.subr.mxu0 0.0
    %1184 = vmatpush1.msra.mxu0 %v629
    %1185 = vmatprep.subr.mxu0 0.0
    %1186 = vmatpush1.msra.mxu0 %v630
    %1187 = vmatprep.subr.mxu0 0.0
    %1188 = vmatpush1.msra.mxu0 %v631
    %1189 = vmatprep.subr.mxu0 0.0
    %1190 = vmatpush1.msra.mxu0 %v632
    %1191 = vmatprep.subr.mxu0 0.0
    %1192 = vmatpush1.msra.mxu0 %v633
    %1193 = vmatprep.subr.mxu0 0.0
    %1194 = vmatpush1.msra.mxu0 %v634
    %1195 = vmatprep.subr.mxu0 0.0
    %1196 = vmatpush1.msra.mxu0 %v635
    %1197 = vmatprep.subr.mxu0 0.0
    %1198 = vmatpush1.msra.mxu0 %v636
    %1199 = vmatprep.subr.mxu0 0.0
    %1200 = vmatpush1.msra.mxu0 %v637
    %1201 = vmatprep.subr.mxu0 0.0
    %1202 = vmatpush1.msra.mxu0 %v638
    %1203 = vmatprep.subr.mxu0 0.0
    %1204 = vmatpush1.msra.mxu0 %v639
    %1205 = vmatprep.subr.mxu0 0.0
    %1206 = vmatpush1.msra.mxu0 %v640
    %1207 = vmatprep.subr.mxu0 0.0
    %1208 = vmatpush1.msra.mxu0 %v641
    %1209 = vmatprep.subr.mxu0 0.0
    %1210 = vmatpush1.msra.mxu0 %v642
    %1211 = vmatprep.subr.mxu0 0.0
    %1212 = vmatpush1.msra.mxu0 %v643
    %1213 = vmatprep.subr.mxu0 0.0
    %1214 = vmatpush1.msra.mxu0 %v644
    %1215 = vmatprep.subr.mxu0 0.0
    %1216 = vmatpush1.msra.mxu0 %v645
    %1217 = vmatprep.subr.mxu0 0.0
    %1218 = vmatpush1.msra.mxu0 %v646
    %1219 = vmatprep.subr.mxu0 0.0
    %1220 = vmatpush1.msra.mxu0 %v647
    %1221 = vmatprep.subr.mxu0 0.0
    %1222 = vmatpush1.msra.mxu0 %v648
    %1223 = vmatprep.subr.mxu0 0.0
    %1224 = vmatpush1.msra.mxu0 %v649
    %1225 = vmatprep.subr.mxu0 0.0
    %1226 = vmatpush1.msra.mxu0 %v650
    %1227 = vmatprep.subr.mxu0 0.0
    %1228 = vmatpush1.msra.mxu0 %v651
    %1229 = vmatprep.subr.mxu0 0.0
    %1230 = vmatpush1.msra.mxu0 %v652
    %1231 = vmatprep.mubr.f32.mxu0 %v668
    %1232 = vmatmul.mubr.f32.gmra.mrb[0].mxu0 %v140
    %v1233 = vpop.f32.mrb[0].mxu0
    %v1234 = vadd.f32 %v1164, %v1233
    %v1235 = vpop.f32.mrb[0].mxu0
    %1236 = vdwg.mxu0
    %v1237 = vld [vmem:[%s4] sm:$0xf]
    %v1238 = vld [vmem:[%s4 + $0x4] sm:$0xf]
    %v1239 = vunpack.c.l.bf16 %v1237
    %v1240 = vunpack.c.l.bf16 %v1238
    %vm1241 = vcmask 130048
    %v1242 = vsel %vm1241, %v34, 0
    %1244 = vmatprep.subr.mxu0 0.0
    %1245 = vmatpush1.msra.mxu0 %v1239
    %1246 = vmatprep.subr.mxu0 0.0
    %1247 = vmatpush1.msra.mxu0 %v1240
    %1248 = vmatprep.subr.mxu0 0.0
    %1249 = vmatpush1.msra.mxu0 0.0
    %1250 = vmatprep.subr.mxu0 0.0
    %1251 = vmatpush1.msra.mxu0 0.0
    %1252 = vmatprep.subr.mxu0 0.0
    %1253 = vmatpush1.msra.mxu0 0.0
    %1254 = vmatprep.subr.mxu0 0.0
    %1255 = vmatpush1.msra.mxu0 0.0
    %1256 = vmatprep.subr.mxu0 0.0
    %1257 = vmatpush1.msra.mxu0 0.0
    %1258 = vmatprep.subr.mxu0 0.0
    %1259 = vmatpush1.msra.mxu0 0.0
    %1260 = vmatprep.subr.mxu0 0.0
    %1261 = vmatpush1.msra.mxu0 0.0
    %1262 = vmatprep.subr.mxu0 0.0
    %1263 = vmatpush1.msra.mxu0 0.0
    %1264 = vmatprep.subr.mxu0 0.0
    %1265 = vmatpush1.msra.mxu0 0.0
    %1266 = vmatprep.subr.mxu0 0.0
    %1267 = vmatpush1.msra.mxu0 0.0
    %1268 = vmatprep.subr.mxu0 0.0
    %1269 = vmatpush1.msra.mxu0 0.0
    %1270 = vmatprep.subr.mxu0 0.0
    %1271 = vmatpush1.msra.mxu0 0.0
    %1272 = vmatprep.subr.mxu0 0.0
    %1273 = vmatpush1.msra.mxu0 0.0
    %1274 = vmatprep.subr.mxu0 0.0
    %1275 = vmatpush1.msra.mxu0 0.0
    %1276 = vmatprep.subr.mxu0 0.0
    %1277 = vmatpush1.msra.mxu0 0.0
    %1278 = vmatprep.subr.mxu0 0.0
    %1279 = vmatpush1.msra.mxu0 0.0
    %1280 = vmatprep.subr.mxu0 0.0
    %1281 = vmatpush1.msra.mxu0 0.0
    %1282 = vmatprep.subr.mxu0 0.0
    %1283 = vmatpush1.msra.mxu0 0.0
    %1284 = vmatprep.subr.mxu0 0.0
    %1285 = vmatpush1.msra.mxu0 0.0
    %1286 = vmatprep.subr.mxu0 0.0
    %1287 = vmatpush1.msra.mxu0 0.0
    %1288 = vmatprep.subr.mxu0 0.0
    %1289 = vmatpush1.msra.mxu0 0.0
    %1290 = vmatprep.subr.mxu0 0.0
    %1291 = vmatpush1.msra.mxu0 0.0
    %1292 = vmatprep.subr.mxu0 0.0
    %1293 = vmatpush1.msra.mxu0 0.0
    %1294 = vmatprep.subr.mxu0 0.0
    %1295 = vmatpush1.msra.mxu0 0.0
    %1296 = vmatprep.subr.mxu0 0.0
    %1297 = vmatpush1.msra.mxu0 0.0
    %1298 = vmatprep.subr.mxu0 0.0
    %1299 = vmatpush1.msra.mxu0 0.0
    %1300 = vmatprep.subr.mxu0 0.0
    %1301 = vmatpush1.msra.mxu0 0.0
    %1302 = vmatprep.subr.mxu0 0.0
    %1303 = vmatpush1.msra.mxu0 0.0
    %1304 = vmatprep.subr.mxu0 0.0
    %1305 = vmatpush1.msra.mxu0 0.0
    %1306 = vmatprep.subr.mxu0 0.0
    %1307 = vmatpush1.msra.mxu0 0.0
    %1308 = vmatprep.mubr.f32.mxu0 0.0
    %1309 = vmatmul.mubr.f32.gmra.mrb[0].mxu0 %v1242
    %v1310 = vpop.f32.mrb[0].mxu0
    %v1311 = vadd.f32 0.0, %v1310
    %v1312 = vpop.f32.mrb[0].mxu0
    %1313 = vdwg.mxu0
    %v1314 = vld [vmem:[%s2] sm:$0xf]
    %v1315 = vadd.f32 %v1314, %v1234
    %v1316 = vadd.f32 %v1315, %v1311
    %1317 = vst [vmem:[%s5] sm:$0xf] %v1316
    // Predicated region
    $region26: #{sru_cell_forward_prepared.1} parent=1 // pred_check
      _
    $region27: #{sru_cell_forward_prepared.1} parent=1 // pred_check_branch
      %1319 = sbr.rel (0) target = $region29
    $region28: #{sru_cell_forward_prepared.1} parent=1 // pred_region
      _
    $region29: #{sru_cell_forward_prepared.1} parent=1 // pred_fallthru
      _
    // Predicated region
    $region30: #{sru_cell_forward_prepared.1} parent=1 // pred_check
      _
    $region31: #{sru_cell_forward_prepared.1} parent=1 // pred_check_branch
      %1321 = sbr.rel (0) target = $region33
    $region32: #{sru_cell_forward_prepared.1} parent=1 // pred_region
      _
    $region33: #{sru_cell_forward_prepared.1} parent=1 // pred_fallthru
      _
    %1322 = vsyncpa [#allocation4], 1

</llo_original>
